<compile_context>
chip_gen: v7x
topology: tpu7x:2x2x1
jax: 0.10.0
libtpu: 0.0.40
codegen_flags: <defaults>
</compile_context>

<pallas_src>
import functools

import jax
import jax.numpy as jnp
from jax.experimental import pallas as pl
from jax.experimental.pallas import tpu as pltpu


# ----------------------------------------------------------------------------
# Fused multi-layer LSTM kernel (single invocation, no grid).
# Gate order matches PyTorch: [i, f, g, o].
# ----------------------------------------------------------------------------
def _caption_lstm_kernel(num_layers, T, B, H, *refs):
    """refs layout:
      refs[0]                 : x slab       (T*B, E)    time-major input
      refs[1 + 3*l + 0]       : W_ih^T       (E_in, 4H)  layer l (resident)
      refs[1 + 3*l + 1]       : W_hh^T       (H,    4H)  layer l (resident)
      refs[1 + 3*l + 2]       : bias         (1,    4H)  layer l (b_ih + b_hh)
      refs[1 + 3*num_layers]  : out slab     (T*B, H)
      refs[2 + 3*num_layers]  : hid scratch  (T*B, H)    inter-layer VMEM buffer
    """
    x_ref = refs[0]
    w_refs = refs[1:1 + 3 * num_layers]
    out_ref = refs[1 + 3 * num_layers]
    hid_sc = refs[2 + 3 * num_layers]

    x = x_ref[...].astype(jnp.float32)                      # (T*B, E_in)

    for layer in range(num_layers):
        wih = w_refs[3 * layer][...]                        # (E_in, 4H)
        whh = w_refs[3 * layer + 1][...]                    # (H,    4H)
        bias = w_refs[3 * layer + 2][...]                   # (1,    4H)

        # Hoisted input projection for the whole sequence: one big MXU matmul
        # at M = T*B instead of T tiny M = B matmuls inside the recurrence.
        pre = jnp.dot(x, wih, preferred_element_type=jnp.float32) + bias   # (T*B, 4H)

        dst = out_ref if layer == num_layers - 1 else hid_sc

        h = jnp.zeros((B, H), jnp.float32)
        c = jnp.zeros((B, H), jnp.float32)

        # Fully unrolled serial recurrence; only h @ W_hh^T is on the critical path.
        for t in range(T):
            gates = pre[t * B:(t + 1) * B, :] + jnp.dot(
                h, whh, preferred_element_type=jnp.float32)                # (B, 4H)
            # Full-vreg transcendentals (one sigmoid + one tanh over all 4H lanes),
            # then static lane slices for the individual gates.
            sig = jax.nn.sigmoid(gates)
            th = jnp.tanh(gates)
            i_g = sig[:, 0 * H:1 * H]
            f_g = sig[:, 1 * H:2 * H]
            g_g = th[:, 2 * H:3 * H]
            o_g = sig[:, 3 * H:4 * H]
            c = f_g * c + i_g * g_g
            h = o_g * jnp.tanh(c)
            dst[t * B:(t + 1) * B, :] = h.astype(dst.dtype)

        if layer != num_layers - 1:
            x = hid_sc[...]                                  # next layer's input slab


def caption_rnn_forward(lstm_params, features, captions):
    """features: (B, E), captions: (B, Tc, E) -> hiddens (B, Tc, H)."""
    # embeddings = cat(features.unsqueeze(1), captions, 1)[:, :-1, :]
    emb = jnp.concatenate([features[:, None, :], captions], axis=1)[:, :-1, :]  # (B, T, E)
    B, T, E = emb.shape
    H = lstm_params[0][1].shape[1]          # w_hh: (4H, H)
    num_layers = len(lstm_params)

    # Time-major, lane-dense 2-D slab for the kernel.
    x_slab = jnp.transpose(emb, (1, 0, 2)).reshape(T * B, E)

    flat_weights = []
    for (w_ih, w_hh, b_ih, b_hh) in lstm_params:
        flat_weights.append(jnp.transpose(w_ih))                 # (E_in, 4H)
        flat_weights.append(jnp.transpose(w_hh))                 # (H,    4H)
        flat_weights.append((b_ih + b_hh).reshape(1, 4 * H))     # (1,    4H)

    kernel = functools.partial(_caption_lstm_kernel, num_layers, T, B, H)
    n_inputs = 1 + 3 * num_layers
    vmem = pltpu.MemorySpace.VMEM

    out_slab = pl.pallas_call(
        kernel,
        out_shape=jax.ShapeDtypeStruct((T * B, H), jnp.float32),
        in_specs=[pl.BlockSpec(memory_space=vmem)] * n_inputs,
        out_specs=pl.BlockSpec(memory_space=vmem),
        scratch_shapes=[pltpu.VMEM((T * B, H), jnp.float32)],    # inter-layer hiddens
    )(x_slab, *flat_weights)

    return jnp.transpose(out_slab.reshape(T, B, H), (1, 0, 2))   # (B, T, H) batch_first


# ----------------------------------------------------------------------------
# Deterministic parameter init (PyTorch LSTM shapes; U(-1/sqrt(H), 1/sqrt(H))).
# ----------------------------------------------------------------------------
def init_lstm_params(key, embed_size, hidden_size, num_layers):
    params = []
    bound = 1.0 / float(hidden_size) ** 0.5
    for layer in range(num_layers):
        in_sz = embed_size if layer == 0 else hidden_size
        key, k0, k1, k2, k3 = jax.random.split(key, 5)
        w_ih = jax.random.uniform(k0, (4 * hidden_size, in_sz), jnp.float32, -bound, bound)
        w_hh = jax.random.uniform(k1, (4 * hidden_size, hidden_size), jnp.float32, -bound, bound)
        b_ih = jax.random.uniform(k2, (4 * hidden_size,), jnp.float32, -bound, bound)
        b_hh = jax.random.uniform(k3, (4 * hidden_size,), jnp.float32, -bound, bound)
        params.append((w_ih, w_hh, b_ih, b_hh))
    return params


# ----------------------------------------------------------------------------
# Pure-JAX reference (for silent correctness check).
# ----------------------------------------------------------------------------
def _lstm_layer_ref(x_tbe, w_ih, w_hh, b_ih, b_hh):
    T, B, _ = x_tbe.shape
    H = w_hh.shape[1]

    def step(carry, x_t):
        h, c = carry
        gates = x_t @ w_ih.T + h @ w_hh.T + b_ih + b_hh
        i = jax.nn.sigmoid(gates[:, 0 * H:1 * H])
        f = jax.nn.sigmoid(gates[:, 1 * H:2 * H])
        g = jnp.tanh(gates[:, 2 * H:3 * H])
        o = jax.nn.sigmoid(gates[:, 3 * H:4 * H])
        c = f * c + i * g
        h = o * jnp.tanh(c)
        return (h, c), h

    init = (jnp.zeros((B, H), jnp.float32), jnp.zeros((B, H), jnp.float32))
    _, hs = jax.lax.scan(step, init, x_tbe)
    return hs


def caption_rnn_forward_ref(lstm_params, features, captions):
    emb = jnp.concatenate([features[:, None, :], captions], axis=1)[:, :-1, :]
    x = jnp.transpose(emb, (1, 0, 2))
    for (w_ih, w_hh, b_ih, b_hh) in lstm_params:
        x = _lstm_layer_ref(x, w_ih, w_hh, b_ih, b_hh)
    return jnp.transpose(x, (1, 0, 2))


if __name__ == "__main__":
    # Small shapes consistent with the module's forward:
    #   features: (B, E), captions: (B, Tc, E)  with embed_size = E.
    B, E, H, Tc, num_layers = 2, 32, 32, 8, 2

    key = jax.random.PRNGKey(0)
    kf, kc, kp = jax.random.split(key, 3)
    features = jax.random.normal(kf, (B, E), jnp.float32)
    captions = jax.random.normal(kc, (B, Tc, E), jnp.float32)
    lstm_params = init_lstm_params(kp, E, H, num_layers)

    out = caption_rnn_forward(lstm_params, features, captions)
    out = jax.block_until_ready(out)

    assert out.shape == (B, Tc, H), out.shape

    ref = jax.block_until_ready(caption_rnn_forward_ref(lstm_params, features, captions))
    assert jnp.allclose(out, ref, atol=1e-5, rtol=1e-5), float(jnp.max(jnp.abs(out - ref)))

    print("KERNEL_OK")
</pallas_src>

<mosaic_0001>
module attributes {stable_mosaic.version = 11 : i64} {
  func.func @_caption_lstm_kernel(%arg0: memref<16x32xf32, #tpu.memory_space<vmem>>, %arg1: memref<32x128xf32, #tpu.memory_space<vmem>>, %arg2: memref<32x128xf32, #tpu.memory_space<vmem>>, %arg3: memref<1x128xf32, #tpu.memory_space<vmem>>, %arg4: memref<32x128xf32, #tpu.memory_space<vmem>>, %arg5: memref<32x128xf32, #tpu.memory_space<vmem>>, %arg6: memref<1x128xf32, #tpu.memory_space<vmem>>, %arg7: memref<16x32xf32, #tpu.memory_space<vmem>>, %arg8: memref<16x32xf32, #tpu.memory_space<vmem>>) attributes {dimension_semantics = [], scalar_prefetch = 0 : i64, scratch_operands = 1 : i64, tpu.core_type = #tpu.core_type<tc>} {
    %c0 = arith.constant 0 : index
    %c0_0 = arith.constant 0 : index
    %0 = vector.load %arg0[%c0, %c0_0] : memref<16x32xf32, #tpu.memory_space<vmem>>, vector<16x32xf32>
    %c0_1 = arith.constant 0 : index
    %c0_2 = arith.constant 0 : index
    %1 = vector.load %arg1[%c0_1, %c0_2] : memref<32x128xf32, #tpu.memory_space<vmem>>, vector<32x128xf32>
    %c0_3 = arith.constant 0 : index
    %c0_4 = arith.constant 0 : index
    %2 = vector.load %arg2[%c0_3, %c0_4] : memref<32x128xf32, #tpu.memory_space<vmem>>, vector<32x128xf32>
    %c0_5 = arith.constant 0 : index
    %c0_6 = arith.constant 0 : index
    %3 = vector.load %arg3[%c0_5, %c0_6] : memref<1x128xf32, #tpu.memory_space<vmem>>, vector<1x128xf32>
    %cst = arith.constant dense<0.000000e+00> : vector<16x128xf32>
    %4 = tpu.matmul %0, %1, %cst {dimension_numbers = #tpu.dot_dimension_numbers<[1], [0], [0], [1], [0, 0, 1, 1], [], []>} : vector<16x32xf32>, vector<32x128xf32>, vector<16x128xf32> -> vector<16x128xf32>
    %5 = vector.broadcast %3 : vector<1x128xf32> to vector<16x128xf32>
    %6 = arith.addf %4, %5 : vector<16x128xf32>
    %cst_7 = arith.constant 0.000000e+00 : f32
    %7 = vector.broadcast %cst_7 : f32 to vector<2x32xf32>
    %cst_8 = arith.constant 0.000000e+00 : f32
    %8 = vector.broadcast %cst_8 : f32 to vector<2x32xf32>
    %9 = vector.extract_strided_slice %6 {offsets = [0, 0], sizes = [2, 128], strides = [1, 1]} : vector<16x128xf32> to vector<2x128xf32>
    %cst_9 = arith.constant dense<0.000000e+00> : vector<2x128xf32>
    %10 = tpu.matmul %7, %2, %cst_9 {dimension_numbers = #tpu.dot_dimension_numbers<[1], [0], [0], [1], [0, 0, 1, 1], [], []>} : vector<2x32xf32>, vector<32x128xf32>, vector<2x128xf32> -> vector<2x128xf32>
    %11 = arith.addf %9, %10 : vector<2x128xf32>
    %12 = arith.negf %11 : vector<2x128xf32>
    %13 = math.exp %12 : vector<2x128xf32>
    %cst_10 = arith.constant 1.000000e+00 : f32
    %14 = vector.broadcast %cst_10 : f32 to vector<2x128xf32>
    %15 = arith.addf %14, %13 : vector<2x128xf32>
    %16 = arith.divf %14, %15 : vector<2x128xf32>
    %17 = math.tanh %11 : vector<2x128xf32>
    %18 = vector.extract_strided_slice %16 {offsets = [0, 0], sizes = [2, 32], strides = [1, 1]} : vector<2x128xf32> to vector<2x32xf32>
    %19 = vector.extract_strided_slice %16 {offsets = [0, 32], sizes = [2, 32], strides = [1, 1]} : vector<2x128xf32> to vector<2x32xf32>
    %20 = vector.extract_strided_slice %17 {offsets = [0, 64], sizes = [2, 32], strides = [1, 1]} : vector<2x128xf32> to vector<2x32xf32>
    %21 = vector.extract_strided_slice %16 {offsets = [0, 96], sizes = [2, 32], strides = [1, 1]} : vector<2x128xf32> to vector<2x32xf32>
    %22 = arith.mulf %19, %8 : vector<2x32xf32>
    %23 = arith.mulf %18, %20 : vector<2x32xf32>
    %24 = arith.addf %22, %23 : vector<2x32xf32>
    %25 = math.tanh %24 : vector<2x32xf32>
    %26 = arith.mulf %21, %25 : vector<2x32xf32>
    %c0_11 = arith.constant 0 : index
    %c0_12 = arith.constant 0 : index
    %27 = vector.load %arg8[%c0_11, %c0_12] : memref<16x32xf32, #tpu.memory_space<vmem>>, vector<2x32xf32>
    tpu.vector_store %arg8[%c0_11, %c0_12], %26 {strides = array<i32>} : memref<16x32xf32, #tpu.memory_space<vmem>>, vector<2x32xf32>,
    %28 = vector.extract_strided_slice %6 {offsets = [2, 0], sizes = [2, 128], strides = [1, 1]} : vector<16x128xf32> to vector<2x128xf32>
    %cst_13 = arith.constant dense<0.000000e+00> : vector<2x128xf32>
    %29 = tpu.matmul %26, %2, %cst_13 {dimension_numbers = #tpu.dot_dimension_numbers<[1], [0], [0], [1], [0, 0, 1, 1], [], []>} : vector<2x32xf32>, vector<32x128xf32>, vector<2x128xf32> -> vector<2x128xf32>
    %30 = arith.addf %28, %29 : vector<2x128xf32>
    %31 = arith.negf %30 : vector<2x128xf32>
    %32 = math.exp %31 : vector<2x128xf32>
    %cst_14 = arith.constant 1.000000e+00 : f32
    %33 = vector.broadcast %cst_14 : f32 to vector<2x128xf32>
    %34 = arith.addf %33, %32 : vector<2x128xf32>
    %35 = arith.divf %33, %34 : vector<2x128xf32>
    %36 = math.tanh %30 : vector<2x128xf32>
    %37 = vector.extract_strided_slice %35 {offsets = [0, 0], sizes = [2, 32], strides = [1, 1]} : vector<2x128xf32> to vector<2x32xf32>
    %38 = vector.extract_strided_slice %35 {offsets = [0, 32], sizes = [2, 32], strides = [1, 1]} : vector<2x128xf32> to vector<2x32xf32>
    %39 = vector.extract_strided_slice %36 {offsets = [0, 64], sizes = [2, 32], strides = [1, 1]} : vector<2x128xf32> to vector<2x32xf32>
    %40 = vector.extract_strided_slice %35 {offsets = [0, 96], sizes = [2, 32], strides = [1, 1]} : vector<2x128xf32> to vector<2x32xf32>
    %41 = arith.mulf %38, %24 : vector<2x32xf32>
    %42 = arith.mulf %37, %39 : vector<2x32xf32>
    %43 = arith.addf %41, %42 : vector<2x32xf32>
    %44 = math.tanh %43 : vector<2x32xf32>
    %45 = arith.mulf %40, %44 : vector<2x32xf32>
    %c2 = arith.constant 2 : index
    %c0_15 = arith.constant 0 : index
    %46 = vector.load %arg8[%c2, %c0_15] : memref<16x32xf32, #tpu.memory_space<vmem>>, vector<2x32xf32>
    tpu.vector_store %arg8[%c2, %c0_15], %45 {strides = array<i32>} : memref<16x32xf32, #tpu.memory_space<vmem>>, vector<2x32xf32>,
    %47 = vector.extract_strided_slice %6 {offsets = [4, 0], sizes = [2, 128], strides = [1, 1]} : vector<16x128xf32> to vector<2x128xf32>
    %cst_16 = arith.constant dense<0.000000e+00> : vector<2x128xf32>
    %48 = tpu.matmul %45, %2, %cst_16 {dimension_numbers = #tpu.dot_dimension_numbers<[1], [0], [0], [1], [0, 0, 1, 1], [], []>} : vector<2x32xf32>, vector<32x128xf32>, vector<2x128xf32> -> vector<2x128xf32>
    %49 = arith.addf %47, %48 : vector<2x128xf32>
    %50 = arith.negf %49 : vector<2x128xf32>
    %51 = math.exp %50 : vector<2x128xf32>
    %cst_17 = arith.constant 1.000000e+00 : f32
    %52 = vector.broadcast %cst_17 : f32 to vector<2x128xf32>
    %53 = arith.addf %52, %51 : vector<2x128xf32>
    %54 = arith.divf %52, %53 : vector<2x128xf32>
    %55 = math.tanh %49 : vector<2x128xf32>
    %56 = vector.extract_strided_slice %54 {offsets = [0, 0], sizes = [2, 32], strides = [1, 1]} : vector<2x128xf32> to vector<2x32xf32>
    %57 = vector.extract_strided_slice %54 {offsets = [0, 32], sizes = [2, 32], strides = [1, 1]} : vector<2x128xf32> to vector<2x32xf32>
    %58 = vector.extract_strided_slice %55 {offsets = [0, 64], sizes = [2, 32], strides = [1, 1]} : vector<2x128xf32> to vector<2x32xf32>
    %59 = vector.extract_strided_slice %54 {offsets = [0, 96], sizes = [2, 32], strides = [1, 1]} : vector<2x128xf32> to vector<2x32xf32>
    %60 = arith.mulf %57, %43 : vector<2x32xf32>
    %61 = arith.mulf %56, %58 : vector<2x32xf32>
    %62 = arith.addf %60, %61 : vector<2x32xf32>
    %63 = math.tanh %62 : vector<2x32xf32>
    %64 = arith.mulf %59, %63 : vector<2x32xf32>
    %c4 = arith.constant 4 : index
    %c0_18 = arith.constant 0 : index
    %65 = vector.load %arg8[%c4, %c0_18] : memref<16x32xf32, #tpu.memory_space<vmem>>, vector<2x32xf32>
    tpu.vector_store %arg8[%c4, %c0_18], %64 {strides = array<i32>} : memref<16x32xf32, #tpu.memory_space<vmem>>, vector<2x32xf32>,
    %66 = vector.extract_strided_slice %6 {offsets = [6, 0], sizes = [2, 128], strides = [1, 1]} : vector<16x128xf32> to vector<2x128xf32>
    %cst_19 = arith.constant dense<0.000000e+00> : vector<2x128xf32>
    %67 = tpu.matmul %64, %2, %cst_19 {dimension_numbers = #tpu.dot_dimension_numbers<[1], [0], [0], [1], [0, 0, 1, 1], [], []>} : vector<2x32xf32>, vector<32x128xf32>, vector<2x128xf32> -> vector<2x128xf32>
    %68 = arith.addf %66, %67 : vector<2x128xf32>
    %69 = arith.negf %68 : vector<2x128xf32>
    %70 = math.exp %69 : vector<2x128xf32>
    %cst_20 = arith.constant 1.000000e+00 : f32
    %71 = vector.broadcast %cst_20 : f32 to vector<2x128xf32>
    %72 = arith.addf %71, %70 : vector<2x128xf32>
    %73 = arith.divf %71, %72 : vector<2x128xf32>
    %74 = math.tanh %68 : vector<2x128xf32>
    %75 = vector.extract_strided_slice %73 {offsets = [0, 0], sizes = [2, 32], strides = [1, 1]} : vector<2x128xf32> to vector<2x32xf32>
    %76 = vector.extract_strided_slice %73 {offsets = [0, 32], sizes = [2, 32], strides = [1, 1]} : vector<2x128xf32> to vector<2x32xf32>
    %77 = vector.extract_strided_slice %74 {offsets = [0, 64], sizes = [2, 32], strides = [1, 1]} : vector<2x128xf32> to vector<2x32xf32>
    %78 = vector.extract_strided_slice %73 {offsets = [0, 96], sizes = [2, 32], strides = [1, 1]} : vector<2x128xf32> to vector<2x32xf32>
    %79 = arith.mulf %76, %62 : vector<2x32xf32>
    %80 = arith.mulf %75, %77 : vector<2x32xf32>
    %81 = arith.addf %79, %80 : vector<2x32xf32>
    %82 = math.tanh %81 : vector<2x32xf32>
    %83 = arith.mulf %78, %82 : vector<2x32xf32>
    %c6 = arith.constant 6 : index
    %c0_21 = arith.constant 0 : index
    %84 = vector.load %arg8[%c6, %c0_21] : memref<16x32xf32, #tpu.memory_space<vmem>>, vector<2x32xf32>
    tpu.vector_store %arg8[%c6, %c0_21], %83 {strides = array<i32>} : memref<16x32xf32, #tpu.memory_space<vmem>>, vector<2x32xf32>,
    %85 = vector.extract_strided_slice %6 {offsets = [8, 0], sizes = [2, 128], strides = [1, 1]} : vector<16x128xf32> to vector<2x128xf32>
    %cst_22 = arith.constant dense<0.000000e+00> : vector<2x128xf32>
    %86 = tpu.matmul %83, %2, %cst_22 {dimension_numbers = #tpu.dot_dimension_numbers<[1], [0], [0], [1], [0, 0, 1, 1], [], []>} : vector<2x32xf32>, vector<32x128xf32>, vector<2x128xf32> -> vector<2x128xf32>
    %87 = arith.addf %85, %86 : vector<2x128xf32>
    %88 = arith.negf %87 : vector<2x128xf32>
    %89 = math.exp %88 : vector<2x128xf32>
    %cst_23 = arith.constant 1.000000e+00 : f32
    %90 = vector.broadcast %cst_23 : f32 to vector<2x128xf32>
    %91 = arith.addf %90, %89 : vector<2x128xf32>
    %92 = arith.divf %90, %91 : vector<2x128xf32>
    %93 = math.tanh %87 : vector<2x128xf32>
    %94 = vector.extract_strided_slice %92 {offsets = [0, 0], sizes = [2, 32], strides = [1, 1]} : vector<2x128xf32> to vector<2x32xf32>
    %95 = vector.extract_strided_slice %92 {offsets = [0, 32], sizes = [2, 32], strides = [1, 1]} : vector<2x128xf32> to vector<2x32xf32>
    %96 = vector.extract_strided_slice %93 {offsets = [0, 64], sizes = [2, 32], strides = [1, 1]} : vector<2x128xf32> to vector<2x32xf32>
    %97 = vector.extract_strided_slice %92 {offsets = [0, 96], sizes = [2, 32], strides = [1, 1]} : vector<2x128xf32> to vector<2x32xf32>
    %98 = arith.mulf %95, %81 : vector<2x32xf32>
    %99 = arith.mulf %94, %96 : vector<2x32xf32>
    %100 = arith.addf %98, %99 : vector<2x32xf32>
    %101 = math.tanh %100 : vector<2x32xf32>
    %102 = arith.mulf %97, %101 : vector<2x32xf32>
    %c8 = arith.constant 8 : index
    %c0_24 = arith.constant 0 : index
    %103 = vector.load %arg8[%c8, %c0_24] : memref<16x32xf32, #tpu.memory_space<vmem>>, vector<2x32xf32>
    tpu.vector_store %arg8[%c8, %c0_24], %102 {strides = array<i32>} : memref<16x32xf32, #tpu.memory_space<vmem>>, vector<2x32xf32>,
    %104 = vector.extract_strided_slice %6 {offsets = [10, 0], sizes = [2, 128], strides = [1, 1]} : vector<16x128xf32> to vector<2x128xf32>
    %cst_25 = arith.constant dense<0.000000e+00> : vector<2x128xf32>
    %105 = tpu.matmul %102, %2, %cst_25 {dimension_numbers = #tpu.dot_dimension_numbers<[1], [0], [0], [1], [0, 0, 1, 1], [], []>} : vector<2x32xf32>, vector<32x128xf32>, vector<2x128xf32> -> vector<2x128xf32>
    %106 = arith.addf %104, %105 : vector<2x128xf32>
    %107 = arith.negf %106 : vector<2x128xf32>
    %108 = math.exp %107 : vector<2x128xf32>
    %cst_26 = arith.constant 1.000000e+00 : f32
    %109 = vector.broadcast %cst_26 : f32 to vector<2x128xf32>
    %110 = arith.addf %109, %108 : vector<2x128xf32>
    %111 = arith.divf %109, %110 : vector<2x128xf32>
    %112 = math.tanh %106 : vector<2x128xf32>
    %113 = vector.extract_strided_slice %111 {offsets = [0, 0], sizes = [2, 32], strides = [1, 1]} : vector<2x128xf32> to vector<2x32xf32>
    %114 = vector.extract_strided_slice %111 {offsets = [0, 32], sizes = [2, 32], strides = [1, 1]} : vector<2x128xf32> to vector<2x32xf32>
    %115 = vector.extract_strided_slice %112 {offsets = [0, 64], sizes = [2, 32], strides = [1, 1]} : vector<2x128xf32> to vector<2x32xf32>
    %116 = vector.extract_strided_slice %111 {offsets = [0, 96], sizes = [2, 32], strides = [1, 1]} : vector<2x128xf32> to vector<2x32xf32>
    %117 = arith.mulf %114, %100 : vector<2x32xf32>
    %118 = arith.mulf %113, %115 : vector<2x32xf32>
    %119 = arith.addf %117, %118 : vector<2x32xf32>
    %120 = math.tanh %119 : vector<2x32xf32>
    %121 = arith.mulf %116, %120 : vector<2x32xf32>
    %c10 = arith.constant 10 : index
    %c0_27 = arith.constant 0 : index
    %122 = vector.load %arg8[%c10, %c0_27] : memref<16x32xf32, #tpu.memory_space<vmem>>, vector<2x32xf32>
    tpu.vector_store %arg8[%c10, %c0_27], %121 {strides = array<i32>} : memref<16x32xf32, #tpu.memory_space<vmem>>, vector<2x32xf32>,
    %123 = vector.extract_strided_slice %6 {offsets = [12, 0], sizes = [2, 128], strides = [1, 1]} : vector<16x128xf32> to vector<2x128xf32>
    %cst_28 = arith.constant dense<0.000000e+00> : vector<2x128xf32>
    %124 = tpu.matmul %121, %2, %cst_28 {dimension_numbers = #tpu.dot_dimension_numbers<[1], [0], [0], [1], [0, 0, 1, 1], [], []>} : vector<2x32xf32>, vector<32x128xf32>, vector<2x128xf32> -> vector<2x128xf32>
    %125 = arith.addf %123, %124 : vector<2x128xf32>
    %126 = arith.negf %125 : vector<2x128xf32>
    %127 = math.exp %126 : vector<2x128xf32>
    %cst_29 = arith.constant 1.000000e+00 : f32
    %128 = vector.broadcast %cst_29 : f32 to vector<2x128xf32>
    %129 = arith.addf %128, %127 : vector<2x128xf32>
    %130 = arith.divf %128, %129 : vector<2x128xf32>
    %131 = math.tanh %125 : vector<2x128xf32>
    %132 = vector.extract_strided_slice %130 {offsets = [0, 0], sizes = [2, 32], strides = [1, 1]} : vector<2x128xf32> to vector<2x32xf32>
    %133 = vector.extract_strided_slice %130 {offsets = [0, 32], sizes = [2, 32], strides = [1, 1]} : vector<2x128xf32> to vector<2x32xf32>
    %134 = vector.extract_strided_slice %131 {offsets = [0, 64], sizes = [2, 32], strides = [1, 1]} : vector<2x128xf32> to vector<2x32xf32>
    %135 = vector.extract_strided_slice %130 {offsets = [0, 96], sizes = [2, 32], strides = [1, 1]} : vector<2x128xf32> to vector<2x32xf32>
    %136 = arith.mulf %133, %119 : vector<2x32xf32>
    %137 = arith.mulf %132, %134 : vector<2x32xf32>
    %138 = arith.addf %136, %137 : vector<2x32xf32>
    %139 = math.tanh %138 : vector<2x32xf32>
    %140 = arith.mulf %135, %139 : vector<2x32xf32>
    %c12 = arith.constant 12 : index
    %c0_30 = arith.constant 0 : index
    %141 = vector.load %arg8[%c12, %c0_30] : memref<16x32xf32, #tpu.memory_space<vmem>>, vector<2x32xf32>
    tpu.vector_store %arg8[%c12, %c0_30], %140 {strides = array<i32>} : memref<16x32xf32, #tpu.memory_space<vmem>>, vector<2x32xf32>,
    %142 = vector.extract_strided_slice %6 {offsets = [14, 0], sizes = [2, 128], strides = [1, 1]} : vector<16x128xf32> to vector<2x128xf32>
    %cst_31 = arith.constant dense<0.000000e+00> : vector<2x128xf32>
    %143 = tpu.matmul %140, %2, %cst_31 {dimension_numbers = #tpu.dot_dimension_numbers<[1], [0], [0], [1], [0, 0, 1, 1], [], []>} : vector<2x32xf32>, vector<32x128xf32>, vector<2x128xf32> -> vector<2x128xf32>
    %144 = arith.addf %142, %143 : vector<2x128xf32>
    %145 = arith.negf %144 : vector<2x128xf32>
    %146 = math.exp %145 : vector<2x128xf32>
    %cst_32 = arith.constant 1.000000e+00 : f32
    %147 = vector.broadcast %cst_32 : f32 to vector<2x128xf32>
    %148 = arith.addf %147, %146 : vector<2x128xf32>
    %149 = arith.divf %147, %148 : vector<2x128xf32>
    %150 = math.tanh %144 : vector<2x128xf32>
    %151 = vector.extract_strided_slice %149 {offsets = [0, 0], sizes = [2, 32], strides = [1, 1]} : vector<2x128xf32> to vector<2x32xf32>
    %152 = vector.extract_strided_slice %149 {offsets = [0, 32], sizes = [2, 32], strides = [1, 1]} : vector<2x128xf32> to vector<2x32xf32>
    %153 = vector.extract_strided_slice %150 {offsets = [0, 64], sizes = [2, 32], strides = [1, 1]} : vector<2x128xf32> to vector<2x32xf32>
    %154 = vector.extract_strided_slice %149 {offsets = [0, 96], sizes = [2, 32], strides = [1, 1]} : vector<2x128xf32> to vector<2x32xf32>
    %155 = arith.mulf %152, %138 : vector<2x32xf32>
    %156 = arith.mulf %151, %153 : vector<2x32xf32>
    %157 = arith.addf %155, %156 : vector<2x32xf32>
    %158 = math.tanh %157 : vector<2x32xf32>
    %159 = arith.mulf %154, %158 : vector<2x32xf32>
    %c14 = arith.constant 14 : index
    %c0_33 = arith.constant 0 : index
    %160 = vector.load %arg8[%c14, %c0_33] : memref<16x32xf32, #tpu.memory_space<vmem>>, vector<2x32xf32>
    tpu.vector_store %arg8[%c14, %c0_33], %159 {strides = array<i32>} : memref<16x32xf32, #tpu.memory_space<vmem>>, vector<2x32xf32>,
    %c0_34 = arith.constant 0 : index
    %c0_35 = arith.constant 0 : index
    %161 = vector.load %arg8[%c0_34, %c0_35] : memref<16x32xf32, #tpu.memory_space<vmem>>, vector<16x32xf32>
    %c0_36 = arith.constant 0 : index
    %c0_37 = arith.constant 0 : index
    %162 = vector.load %arg4[%c0_36, %c0_37] : memref<32x128xf32, #tpu.memory_space<vmem>>, vector<32x128xf32>
    %c0_38 = arith.constant 0 : index
    %c0_39 = arith.constant 0 : index
    %163 = vector.load %arg5[%c0_38, %c0_39] : memref<32x128xf32, #tpu.memory_space<vmem>>, vector<32x128xf32>
    %c0_40 = arith.constant 0 : index
    %c0_41 = arith.constant 0 : index
    %164 = vector.load %arg6[%c0_40, %c0_41] : memref<1x128xf32, #tpu.memory_space<vmem>>, vector<1x128xf32>
    %cst_42 = arith.constant dense<0.000000e+00> : vector<16x128xf32>
    %165 = tpu.matmul %161, %162, %cst_42 {dimension_numbers = #tpu.dot_dimension_numbers<[1], [0], [0], [1], [0, 0, 1, 1], [], []>} : vector<16x32xf32>, vector<32x128xf32>, vector<16x128xf32> -> vector<16x128xf32>
    %166 = vector.broadcast %164 : vector<1x128xf32> to vector<16x128xf32>
    %167 = arith.addf %165, %166 : vector<16x128xf32>
    %cst_43 = arith.constant 0.000000e+00 : f32
    %168 = vector.broadcast %cst_43 : f32 to vector<2x32xf32>
    %cst_44 = arith.constant 0.000000e+00 : f32
    %169 = vector.broadcast %cst_44 : f32 to vector<2x32xf32>
    %170 = vector.extract_strided_slice %167 {offsets = [0, 0], sizes = [2, 128], strides = [1, 1]} : vector<16x128xf32> to vector<2x128xf32>
    %cst_45 = arith.constant dense<0.000000e+00> : vector<2x128xf32>
    %171 = tpu.matmul %168, %163, %cst_45 {dimension_numbers = #tpu.dot_dimension_numbers<[1], [0], [0], [1], [0, 0, 1, 1], [], []>} : vector<2x32xf32>, vector<32x128xf32>, vector<2x128xf32> -> vector<2x128xf32>
    %172 = arith.addf %170, %171 : vector<2x128xf32>
    %173 = arith.negf %172 : vector<2x128xf32>
    %174 = math.exp %173 : vector<2x128xf32>
    %cst_46 = arith.constant 1.000000e+00 : f32
    %175 = vector.broadcast %cst_46 : f32 to vector<2x128xf32>
    %176 = arith.addf %175, %174 : vector<2x128xf32>
    %177 = arith.divf %175, %176 : vector<2x128xf32>
    %178 = math.tanh %172 : vector<2x128xf32>
    %179 = vector.extract_strided_slice %177 {offsets = [0, 0], sizes = [2, 32], strides = [1, 1]} : vector<2x128xf32> to vector<2x32xf32>
    %180 = vector.extract_strided_slice %177 {offsets = [0, 32], sizes = [2, 32], strides = [1, 1]} : vector<2x128xf32> to vector<2x32xf32>
    %181 = vector.extract_strided_slice %178 {offsets = [0, 64], sizes = [2, 32], strides = [1, 1]} : vector<2x128xf32> to vector<2x32xf32>
    %182 = vector.extract_strided_slice %177 {offsets = [0, 96], sizes = [2, 32], strides = [1, 1]} : vector<2x128xf32> to vector<2x32xf32>
    %183 = arith.mulf %180, %169 : vector<2x32xf32>
    %184 = arith.mulf %179, %181 : vector<2x32xf32>
    %185 = arith.addf %183, %184 : vector<2x32xf32>
    %186 = math.tanh %185 : vector<2x32xf32>
    %187 = arith.mulf %182, %186 : vector<2x32xf32>
    %c0_47 = arith.constant 0 : index
    %c0_48 = arith.constant 0 : index
    %188 = vector.load %arg7[%c0_47, %c0_48] : memref<16x32xf32, #tpu.memory_space<vmem>>, vector<2x32xf32>
    tpu.vector_store %arg7[%c0_47, %c0_48], %187 {strides = array<i32>} : memref<16x32xf32, #tpu.memory_space<vmem>>, vector<2x32xf32>,
    %189 = vector.extract_strided_slice %167 {offsets = [2, 0], sizes = [2, 128], strides = [1, 1]} : vector<16x128xf32> to vector<2x128xf32>
    %cst_49 = arith.constant dense<0.000000e+00> : vector<2x128xf32>
    %190 = tpu.matmul %187, %163, %cst_49 {dimension_numbers = #tpu.dot_dimension_numbers<[1], [0], [0], [1], [0, 0, 1, 1], [], []>} : vector<2x32xf32>, vector<32x128xf32>, vector<2x128xf32> -> vector<2x128xf32>
    %191 = arith.addf %189, %190 : vector<2x128xf32>
    %192 = arith.negf %191 : vector<2x128xf32>
    %193 = math.exp %192 : vector<2x128xf32>
    %cst_50 = arith.constant 1.000000e+00 : f32
    %194 = vector.broadcast %cst_50 : f32 to vector<2x128xf32>
    %195 = arith.addf %194, %193 : vector<2x128xf32>
    %196 = arith.divf %194, %195 : vector<2x128xf32>
    %197 = math.tanh %191 : vector<2x128xf32>
    %198 = vector.extract_strided_slice %196 {offsets = [0, 0], sizes = [2, 32], strides = [1, 1]} : vector<2x128xf32> to vector<2x32xf32>
    %199 = vector.extract_strided_slice %196 {offsets = [0, 32], sizes = [2, 32], strides = [1, 1]} : vector<2x128xf32> to vector<2x32xf32>
    %200 = vector.extract_strided_slice %197 {offsets = [0, 64], sizes = [2, 32], strides = [1, 1]} : vector<2x128xf32> to vector<2x32xf32>
    %201 = vector.extract_strided_slice %196 {offsets = [0, 96], sizes = [2, 32], strides = [1, 1]} : vector<2x128xf32> to vector<2x32xf32>
    %202 = arith.mulf %199, %185 : vector<2x32xf32>
    %203 = arith.mulf %198, %200 : vector<2x32xf32>
    %204 = arith.addf %202, %203 : vector<2x32xf32>
    %205 = math.tanh %204 : vector<2x32xf32>
    %206 = arith.mulf %201, %205 : vector<2x32xf32>
    %c2_51 = arith.constant 2 : index
    %c0_52 = arith.constant 0 : index
    %207 = vector.load %arg7[%c2_51, %c0_52] : memref<16x32xf32, #tpu.memory_space<vmem>>, vector<2x32xf32>
    tpu.vector_store %arg7[%c2_51, %c0_52], %206 {strides = array<i32>} : memref<16x32xf32, #tpu.memory_space<vmem>>, vector<2x32xf32>,
    %208 = vector.extract_strided_slice %167 {offsets = [4, 0], sizes = [2, 128], strides = [1, 1]} : vector<16x128xf32> to vector<2x128xf32>
    %cst_53 = arith.constant dense<0.000000e+00> : vector<2x128xf32>
    %209 = tpu.matmul %206, %163, %cst_53 {dimension_numbers = #tpu.dot_dimension_numbers<[1], [0], [0], [1], [0, 0, 1, 1], [], []>} : vector<2x32xf32>, vector<32x128xf32>, vector<2x128xf32> -> vector<2x128xf32>
    %210 = arith.addf %208, %209 : vector<2x128xf32>
    %211 = arith.negf %210 : vector<2x128xf32>
    %212 = math.exp %211 : vector<2x128xf32>
    %cst_54 = arith.constant 1.000000e+00 : f32
    %213 = vector.broadcast %cst_54 : f32 to vector<2x128xf32>
    %214 = arith.addf %213, %212 : vector<2x128xf32>
    %215 = arith.divf %213, %214 : vector<2x128xf32>
    %216 = math.tanh %210 : vector<2x128xf32>
    %217 = vector.extract_strided_slice %215 {offsets = [0, 0], sizes = [2, 32], strides = [1, 1]} : vector<2x128xf32> to vector<2x32xf32>
    %218 = vector.extract_strided_slice %215 {offsets = [0, 32], sizes = [2, 32], strides = [1, 1]} : vector<2x128xf32> to vector<2x32xf32>
    %219 = vector.extract_strided_slice %216 {offsets = [0, 64], sizes = [2, 32], strides = [1, 1]} : vector<2x128xf32> to vector<2x32xf32>
    %220 = vector.extract_strided_slice %215 {offsets = [0, 96], sizes = [2, 32], strides = [1, 1]} : vector<2x128xf32> to vector<2x32xf32>
    %221 = arith.mulf %218, %204 : vector<2x32xf32>
    %222 = arith.mulf %217, %219 : vector<2x32xf32>
    %223 = arith.addf %221, %222 : vector<2x32xf32>
    %224 = math.tanh %223 : vector<2x32xf32>
    %225 = arith.mulf %220, %224 : vector<2x32xf32>
    %c4_55 = arith.constant 4 : index
    %c0_56 = arith.constant 0 : index
    %226 = vector.load %arg7[%c4_55, %c0_56] : memref<16x32xf32, #tpu.memory_space<vmem>>, vector<2x32xf32>
    tpu.vector_store %arg7[%c4_55, %c0_56], %225 {strides = array<i32>} : memref<16x32xf32, #tpu.memory_space<vmem>>, vector<2x32xf32>,
    %227 = vector.extract_strided_slice %167 {offsets = [6, 0], sizes = [2, 128], strides = [1, 1]} : vector<16x128xf32> to vector<2x128xf32>
    %cst_57 = arith.constant dense<0.000000e+00> : vector<2x128xf32>
    %228 = tpu.matmul %225, %163, %cst_57 {dimension_numbers = #tpu.dot_dimension_numbers<[1], [0], [0], [1], [0, 0, 1, 1], [], []>} : vector<2x32xf32>, vector<32x128xf32>, vector<2x128xf32> -> vector<2x128xf32>
    %229 = arith.addf %227, %228 : vector<2x128xf32>
    %230 = arith.negf %229 : vector<2x128xf32>
    %231 = math.exp %230 : vector<2x128xf32>
    %cst_58 = arith.constant 1.000000e+00 : f32
    %232 = vector.broadcast %cst_58 : f32 to vector<2x128xf32>
    %233 = arith.addf %232, %231 : vector<2x128xf32>
    %234 = arith.divf %232, %233 : vector<2x128xf32>
    %235 = math.tanh %229 : vector<2x128xf32>
    %236 = vector.extract_strided_slice %234 {offsets = [0, 0], sizes = [2, 32], strides = [1, 1]} : vector<2x128xf32> to vector<2x32xf32>
    %237 = vector.extract_strided_slice %234 {offsets = [0, 32], sizes = [2, 32], strides = [1, 1]} : vector<2x128xf32> to vector<2x32xf32>
    %238 = vector.extract_strided_slice %235 {offsets = [0, 64], sizes = [2, 32], strides = [1, 1]} : vector<2x128xf32> to vector<2x32xf32>
    %239 = vector.extract_strided_slice %234 {offsets = [0, 96], sizes = [2, 32], strides = [1, 1]} : vector<2x128xf32> to vector<2x32xf32>
    %240 = arith.mulf %237, %223 : vector<2x32xf32>
    %241 = arith.mulf %236, %238 : vector<2x32xf32>
    %242 = arith.addf %240, %241 : vector<2x32xf32>
    %243 = math.tanh %242 : vector<2x32xf32>
    %244 = arith.mulf %239, %243 : vector<2x32xf32>
    %c6_59 = arith.constant 6 : index
    %c0_60 = arith.constant 0 : index
    %245 = vector.load %arg7[%c6_59, %c0_60] : memref<16x32xf32, #tpu.memory_space<vmem>>, vector<2x32xf32>
    tpu.vector_store %arg7[%c6_59, %c0_60], %244 {strides = array<i32>} : memref<16x32xf32, #tpu.memory_space<vmem>>, vector<2x32xf32>,
    %246 = vector.extract_strided_slice %167 {offsets = [8, 0], sizes = [2, 128], strides = [1, 1]} : vector<16x128xf32> to vector<2x128xf32>
    %cst_61 = arith.constant dense<0.000000e+00> : vector<2x128xf32>
    %247 = tpu.matmul %244, %163, %cst_61 {dimension_numbers = #tpu.dot_dimension_numbers<[1], [0], [0], [1], [0, 0, 1, 1], [], []>} : vector<2x32xf32>, vector<32x128xf32>, vector<2x128xf32> -> vector<2x128xf32>
    %248 = arith.addf %246, %247 : vector<2x128xf32>
    %249 = arith.negf %248 : vector<2x128xf32>
    %250 = math.exp %249 : vector<2x128xf32>
    %cst_62 = arith.constant 1.000000e+00 : f32
    %251 = vector.broadcast %cst_62 : f32 to vector<2x128xf32>
    %252 = arith.addf %251, %250 : vector<2x128xf32>
    %253 = arith.divf %251, %252 : vector<2x128xf32>
    %254 = math.tanh %248 : vector<2x128xf32>
    %255 = vector.extract_strided_slice %253 {offsets = [0, 0], sizes = [2, 32], strides = [1, 1]} : vector<2x128xf32> to vector<2x32xf32>
    %256 = vector.extract_strided_slice %253 {offsets = [0, 32], sizes = [2, 32], strides = [1, 1]} : vector<2x128xf32> to vector<2x32xf32>
    %257 = vector.extract_strided_slice %254 {offsets = [0, 64], sizes = [2, 32], strides = [1, 1]} : vector<2x128xf32> to vector<2x32xf32>
    %258 = vector.extract_strided_slice %253 {offsets = [0, 96], sizes = [2, 32], strides = [1, 1]} : vector<2x128xf32> to vector<2x32xf32>
    %259 = arith.mulf %256, %242 : vector<2x32xf32>
    %260 = arith.mulf %255, %257 : vector<2x32xf32>
    %261 = arith.addf %259, %260 : vector<2x32xf32>
    %262 = math.tanh %261 : vector<2x32xf32>
    %263 = arith.mulf %258, %262 : vector<2x32xf32>
    %c8_63 = arith.constant 8 : index
    %c0_64 = arith.constant 0 : index
    %264 = vector.load %arg7[%c8_63, %c0_64] : memref<16x32xf32, #tpu.memory_space<vmem>>, vector<2x32xf32>
    tpu.vector_store %arg7[%c8_63, %c0_64], %263 {strides = array<i32>} : memref<16x32xf32, #tpu.memory_space<vmem>>, vector<2x32xf32>,
    %265 = vector.extract_strided_slice %167 {offsets = [10, 0], sizes = [2, 128], strides = [1, 1]} : vector<16x128xf32> to vector<2x128xf32>
    %cst_65 = arith.constant dense<0.000000e+00> : vector<2x128xf32>
    %266 = tpu.matmul %263, %163, %cst_65 {dimension_numbers = #tpu.dot_dimension_numbers<[1], [0], [0], [1], [0, 0, 1, 1], [], []>} : vector<2x32xf32>, vector<32x128xf32>, vector<2x128xf32> -> vector<2x128xf32>
    %267 = arith.addf %265, %266 : vector<2x128xf32>
    %268 = arith.negf %267 : vector<2x128xf32>
    %269 = math.exp %268 : vector<2x128xf32>
    %cst_66 = arith.constant 1.000000e+00 : f32
    %270 = vector.broadcast %cst_66 : f32 to vector<2x128xf32>
    %271 = arith.addf %270, %269 : vector<2x128xf32>
    %272 = arith.divf %270, %271 : vector<2x128xf32>
    %273 = math.tanh %267 : vector<2x128xf32>
    %274 = vector.extract_strided_slice %272 {offsets = [0, 0], sizes = [2, 32], strides = [1, 1]} : vector<2x128xf32> to vector<2x32xf32>
    %275 = vector.extract_strided_slice %272 {offsets = [0, 32], sizes = [2, 32], strides = [1, 1]} : vector<2x128xf32> to vector<2x32xf32>
    %276 = vector.extract_strided_slice %273 {offsets = [0, 64], sizes = [2, 32], strides = [1, 1]} : vector<2x128xf32> to vector<2x32xf32>
    %277 = vector.extract_strided_slice %272 {offsets = [0, 96], sizes = [2, 32], strides = [1, 1]} : vector<2x128xf32> to vector<2x32xf32>
    %278 = arith.mulf %275, %261 : vector<2x32xf32>
    %279 = arith.mulf %274, %276 : vector<2x32xf32>
    %280 = arith.addf %278, %279 : vector<2x32xf32>
    %281 = math.tanh %280 : vector<2x32xf32>
    %282 = arith.mulf %277, %281 : vector<2x32xf32>
    %c10_67 = arith.constant 10 : index
    %c0_68 = arith.constant 0 : index
    %283 = vector.load %arg7[%c10_67, %c0_68] : memref<16x32xf32, #tpu.memory_space<vmem>>, vector<2x32xf32>
    tpu.vector_store %arg7[%c10_67, %c0_68], %282 {strides = array<i32>} : memref<16x32xf32, #tpu.memory_space<vmem>>, vector<2x32xf32>,
    %284 = vector.extract_strided_slice %167 {offsets = [12, 0], sizes = [2, 128], strides = [1, 1]} : vector<16x128xf32> to vector<2x128xf32>
    %cst_69 = arith.constant dense<0.000000e+00> : vector<2x128xf32>
    %285 = tpu.matmul %282, %163, %cst_69 {dimension_numbers = #tpu.dot_dimension_numbers<[1], [0], [0], [1], [0, 0, 1, 1], [], []>} : vector<2x32xf32>, vector<32x128xf32>, vector<2x128xf32> -> vector<2x128xf32>
    %286 = arith.addf %284, %285 : vector<2x128xf32>
    %287 = arith.negf %286 : vector<2x128xf32>
    %288 = math.exp %287 : vector<2x128xf32>
    %cst_70 = arith.constant 1.000000e+00 : f32
    %289 = vector.broadcast %cst_70 : f32 to vector<2x128xf32>
    %290 = arith.addf %289, %288 : vector<2x128xf32>
    %291 = arith.divf %289, %290 : vector<2x128xf32>
    %292 = math.tanh %286 : vector<2x128xf32>
    %293 = vector.extract_strided_slice %291 {offsets = [0, 0], sizes = [2, 32], strides = [1, 1]} : vector<2x128xf32> to vector<2x32xf32>
    %294 = vector.extract_strided_slice %291 {offsets = [0, 32], sizes = [2, 32], strides = [1, 1]} : vector<2x128xf32> to vector<2x32xf32>
    %295 = vector.extract_strided_slice %292 {offsets = [0, 64], sizes = [2, 32], strides = [1, 1]} : vector<2x128xf32> to vector<2x32xf32>
    %296 = vector.extract_strided_slice %291 {offsets = [0, 96], sizes = [2, 32], strides = [1, 1]} : vector<2x128xf32> to vector<2x32xf32>
    %297 = arith.mulf %294, %280 : vector<2x32xf32>
    %298 = arith.mulf %293, %295 : vector<2x32xf32>
    %299 = arith.addf %297, %298 : vector<2x32xf32>
    %300 = math.tanh %299 : vector<2x32xf32>
    %301 = arith.mulf %296, %300 : vector<2x32xf32>
    %c12_71 = arith.constant 12 : index
    %c0_72 = arith.constant 0 : index
    %302 = vector.load %arg7[%c12_71, %c0_72] : memref<16x32xf32, #tpu.memory_space<vmem>>, vector<2x32xf32>
    tpu.vector_store %arg7[%c12_71, %c0_72], %301 {strides = array<i32>} : memref<16x32xf32, #tpu.memory_space<vmem>>, vector<2x32xf32>,
    %303 = vector.extract_strided_slice %167 {offsets = [14, 0], sizes = [2, 128], strides = [1, 1]} : vector<16x128xf32> to vector<2x128xf32>
    %cst_73 = arith.constant dense<0.000000e+00> : vector<2x128xf32>
    %304 = tpu.matmul %301, %163, %cst_73 {dimension_numbers = #tpu.dot_dimension_numbers<[1], [0], [0], [1], [0, 0, 1, 1], [], []>} : vector<2x32xf32>, vector<32x128xf32>, vector<2x128xf32> -> vector<2x128xf32>
    %305 = arith.addf %303, %304 : vector<2x128xf32>
    %306 = arith.negf %305 : vector<2x128xf32>
    %307 = math.exp %306 : vector<2x128xf32>
    %cst_74 = arith.constant 1.000000e+00 : f32
    %308 = vector.broadcast %cst_74 : f32 to vector<2x128xf32>
    %309 = arith.addf %308, %307 : vector<2x128xf32>
    %310 = arith.divf %308, %309 : vector<2x128xf32>
    %311 = math.tanh %305 : vector<2x128xf32>
    %312 = vector.extract_strided_slice %310 {offsets = [0, 0], sizes = [2, 32], strides = [1, 1]} : vector<2x128xf32> to vector<2x32xf32>
    %313 = vector.extract_strided_slice %310 {offsets = [0, 32], sizes = [2, 32], strides = [1, 1]} : vector<2x128xf32> to vector<2x32xf32>
    %314 = vector.extract_strided_slice %311 {offsets = [0, 64], sizes = [2, 32], strides = [1, 1]} : vector<2x128xf32> to vector<2x32xf32>
    %315 = vector.extract_strided_slice %310 {offsets = [0, 96], sizes = [2, 32], strides = [1, 1]} : vector<2x128xf32> to vector<2x32xf32>
    %316 = arith.mulf %313, %299 : vector<2x32xf32>
    %317 = arith.mulf %312, %314 : vector<2x32xf32>
    %318 = arith.addf %316, %317 : vector<2x32xf32>
    %319 = math.tanh %318 : vector<2x32xf32>
    %320 = arith.mulf %315, %319 : vector<2x32xf32>
    %c14_75 = arith.constant 14 : index
    %c0_76 = arith.constant 0 : index
    %321 = vector.load %arg7[%c14_75, %c0_76] : memref<16x32xf32, #tpu.memory_space<vmem>>, vector<2x32xf32>
    tpu.vector_store %arg7[%c14_75, %c0_76], %320 {strides = array<i32>} : memref<16x32xf32, #tpu.memory_space<vmem>>, vector<2x32xf32>,
    return
  }
}

</mosaic_0001>

<llo_original>
// kernel: tpu_custom_call.1
$region0: #{tpu_custom_call.1}
  #allocation0 [shape = 'u32[]', space=smem, size = 0x4, offset = 0x4, fixed_abs, tag = 'smem constant byte address 0x4 - core index']
  #allocation1 [shape = 'u32[144,128]{1,0:T(1,128)}', space=vmem, size = 0x12000, scoped, tag = 'internal scratch']
  #allocation2 [shape = 'f32[16,32]{1,0:T(8,128)}', space=vmem, size = 0x2000, scoped, tag = 'scratch operand']
  %s0 = inlined_call_operand.hbm [shape: f32[16,32], index: 0, kind: input, shape index: {}]
  %s1 = inlined_call_operand.hbm [shape: f32[32,128], index: 1, kind: input, shape index: {}]
  %s2 = inlined_call_operand.hbm [shape: f32[32,128], index: 2, kind: input, shape index: {}]
  %s3 = inlined_call_operand.vmem [shape: f32[1,128], index: 3, kind: input, shape index: {}]
  %s4 = inlined_call_operand.hbm [shape: f32[32,128], index: 4, kind: input, shape index: {}]
  %s5 = inlined_call_operand.hbm [shape: f32[32,128], index: 5, kind: input, shape index: {}]
  %s6 = inlined_call_operand.vmem [shape: f32[1,128], index: 6, kind: input, shape index: {}]
  %s7 = inlined_call_operand.hbm [shape: f32[16,32], index: 7, kind: output, shape index: {}]
  %s8 = sld [smem:[#allocation0]]
  $region58: #{tpu_custom_call.1} parent=0
    _
  %s10 = ssub.s32 1, %s8
  %s11 = scalar_select 0, %s10, %s8
  $region1: #{tpu_custom_call.1} parent=0
    #allocation3 [shape = 'u8[8192]{0}', space=vmem, size = 0x2000, scoped, tag = 'input window, operand 0, single buffered']
    #allocation4 [shape = 's32[1]{0}', space=sflag, size = 0x4, scoped, tag = 'scoped memory for tpu_custom_call.1']
    #allocation5 [shape = 's32[1]{0}', space=sflag, size = 0x4, scoped, tag = 'scoped memory for tpu_custom_call.1']
    #allocation6 [shape = 'u8[16384]{0}', space=vmem, size = 0x4000, scoped, tag = 'input window, operand 1, single buffered']
    #allocation7 [shape = 's32[1]{0}', space=sflag, size = 0x4, scoped, tag = 'scoped memory for tpu_custom_call.1']
    #allocation8 [shape = 'u8[16384]{0}', space=vmem, size = 0x4000, scoped, tag = 'input window, operand 2, single buffered']
    #allocation9 [shape = 'u8[16384]{0}', space=vmem, size = 0x4000, scoped, tag = 'input window, operand 4, single buffered']
    #allocation10 [shape = 's32[1]{0}', space=sflag, size = 0x4, scoped, tag = 'scoped memory for tpu_custom_call.1']
    #allocation11 [shape = 'u8[16384]{0}', space=vmem, size = 0x4000, scoped, tag = 'input window, operand 5, single buffered']
    #allocation12 [shape = 'u8[8192]{0}', space=vmem, size = 0x2000, scoped, tag = 'output window, operand 0, single buffered']
    %12 = vsyncpa [#allocation4], 0
    %13 = vsyncpa [#allocation7], 0
    %14 = vsyncpa [#allocation10], 0
    %15 = vsyncpa [#allocation5], 0
    // Predicated region
    $region2: #{tpu_custom_call.1} parent=1 // pred_check
      _
    $region3: #{tpu_custom_call.1} parent=1 // pred_check_branch
      %17 = sbr.rel (0) target = $region5
    $region4: #{tpu_custom_call.1} parent=1 // pred_region
      %s19 = ssub.s32 256, 256
      %20 = vsyncadd [#allocation4], %s19
      %s21 = sshll.u32 [#allocation3], 4
      %s22 = int_to_ptr.vmem [resolvable:$true] %s21
      %27 = dma.hbm_to_vmem [thread:$0]  %s0, 256, %s22, [#allocation4], 128, 128, 8
    $region5: #{tpu_custom_call.1} parent=1 // pred_fallthru
      _
    // Predicated region
    $region6: #{tpu_custom_call.1} parent=1 // pred_check
      _
    $region7: #{tpu_custom_call.1} parent=1 // pred_check_branch
      %29 = sbr.rel (0) target = $region9
    $region8: #{tpu_custom_call.1} parent=1 // pred_region
      %s31 = ssub.s32 512, 512
      %32 = vsyncadd [#allocation7], %s31
      %s33 = sshll.u32 [#allocation6], 4
      %s34 = int_to_ptr.vmem [resolvable:$true] %s33
      %39 = dma.hbm_to_vmem [thread:$0]  %s1, 512, %s34, [#allocation7], 128, 128, 8
    $region9: #{tpu_custom_call.1} parent=1 // pred_fallthru
      _
    // Predicated region
    $region10: #{tpu_custom_call.1} parent=1 // pred_check
      _
    $region11: #{tpu_custom_call.1} parent=1 // pred_check_branch
      %41 = sbr.rel (0) target = $region13
    $region12: #{tpu_custom_call.1} parent=1 // pred_region
      %s43 = ssub.s32 512, 512
      %44 = vsyncadd [#allocation7], %s43
      %s45 = sshll.u32 [#allocation8], 4
      %s46 = int_to_ptr.vmem [resolvable:$true] %s45
      %51 = dma.hbm_to_vmem [thread:$0]  %s2, 512, %s46, [#allocation7], 128, 128, 8
    $region13: #{tpu_custom_call.1} parent=1 // pred_fallthru
      _
    // Predicated region
    $region14: #{tpu_custom_call.1} parent=1 // pred_check
      _
    $region15: #{tpu_custom_call.1} parent=1 // pred_check_branch
      %53 = sbr.rel (0) target = $region17
    $region16: #{tpu_custom_call.1} parent=1 // pred_region
      _
    $region17: #{tpu_custom_call.1} parent=1 // pred_fallthru
      _
    // Predicated region
    $region18: #{tpu_custom_call.1} parent=1 // pred_check
      _
    $region19: #{tpu_custom_call.1} parent=1 // pred_check_branch
      %55 = sbr.rel (0) target = $region21
    $region20: #{tpu_custom_call.1} parent=1 // pred_region
      %s57 = ssub.s32 512, 512
      %58 = vsyncadd [#allocation10], %s57
      %s59 = sshll.u32 [#allocation9], 4
      %s60 = int_to_ptr.vmem [resolvable:$true] %s59
      %65 = dma.hbm_to_vmem [thread:$0]  %s4, 512, %s60, [#allocation10], 128, 128, 8
    $region21: #{tpu_custom_call.1} parent=1 // pred_fallthru
      _
    // Predicated region
    $region22: #{tpu_custom_call.1} parent=1 // pred_check
      _
    $region23: #{tpu_custom_call.1} parent=1 // pred_check_branch
      %67 = sbr.rel (0) target = $region25
    $region24: #{tpu_custom_call.1} parent=1 // pred_region
      %s69 = ssub.s32 512, 512
      %70 = vsyncadd [#allocation10], %s69
      %s71 = sshll.u32 [#allocation11], 4
      %s72 = int_to_ptr.vmem [resolvable:$true] %s71
      %77 = dma.hbm_to_vmem [thread:$0]  %s5, 512, %s72, [#allocation10], 128, 128, 8
    $region25: #{tpu_custom_call.1} parent=1 // pred_fallthru
      _
    // Predicated region
    $region26: #{tpu_custom_call.1} parent=1 // pred_check
      _
    $region27: #{tpu_custom_call.1} parent=1 // pred_check_branch
      %79 = sbr.rel (0) target = $region29
    $region28: #{tpu_custom_call.1} parent=1 // pred_region
      _
    $region29: #{tpu_custom_call.1} parent=1 // pred_fallthru
      _
    // Predicated region
    $region30: #{tpu_custom_call.1} parent=1 // pred_check
      _
    $region31: #{tpu_custom_call.1} parent=1 // pred_check_branch
      %81 = sbr.rel (0) target = $region33
    $region32: #{tpu_custom_call.1} parent=1 // pred_region
      %82 = dma.done [#allocation4], 256
    $region33: #{tpu_custom_call.1} parent=1 // pred_fallthru
      _
    // Predicated region
    $region34: #{tpu_custom_call.1} parent=1 // pred_check
      _
    $region35: #{tpu_custom_call.1} parent=1 // pred_check_branch
      %84 = sbr.rel (0) target = $region37
    $region36: #{tpu_custom_call.1} parent=1 // pred_region
      %85 = dma.done [#allocation7], 512
    $region37: #{tpu_custom_call.1} parent=1 // pred_fallthru
      _
    // Predicated region
    $region38: #{tpu_custom_call.1} parent=1 // pred_check
      _
    $region39: #{tpu_custom_call.1} parent=1 // pred_check_branch
      %87 = sbr.rel (0) target = $region41
    $region40: #{tpu_custom_call.1} parent=1 // pred_region
      %88 = dma.done [#allocation7], 512
    $region41: #{tpu_custom_call.1} parent=1 // pred_fallthru
      _
    // Predicated region
    $region42: #{tpu_custom_call.1} parent=1 // pred_check
      _
    $region43: #{tpu_custom_call.1} parent=1 // pred_check_branch
      %90 = sbr.rel (0) target = $region45
    $region44: #{tpu_custom_call.1} parent=1 // pred_region
      %91 = dma.done [#allocation10], 512
    $region45: #{tpu_custom_call.1} parent=1 // pred_fallthru
      _
    // Predicated region
    $region46: #{tpu_custom_call.1} parent=1 // pred_check
      _
    $region47: #{tpu_custom_call.1} parent=1 // pred_check_branch
      %93 = sbr.rel (0) target = $region49
    $region48: #{tpu_custom_call.1} parent=1 // pred_region
      %94 = dma.done [#allocation10], 512
    $region49: #{tpu_custom_call.1} parent=1 // pred_fallthru
      _
    %v95 = vld [vmem:[#allocation3] sm:$0xff]
    %v96 = vld [vmem:[#allocation3 + $0x8] sm:$0xff]
    %v97 = vld [vmem:[#allocation6] sm:$0xff]
    %v98 = vld [vmem:[#allocation6 + $0x8] sm:$0xff]
    %v99 = vld [vmem:[#allocation6 + $0x10] sm:$0xff]
    %v100 = vld [vmem:[#allocation6 + $0x18] sm:$0xff]
    %v101 = vld [vmem:[#allocation8] sm:$0xff]
    %v102 = vld [vmem:[#allocation8 + $0x8] sm:$0xff]
    %v103 = vld [vmem:[#allocation8 + $0x10] sm:$0xff]
    %v104 = vld [vmem:[#allocation8 + $0x18] sm:$0xff]
    %v105 = vld [vmem:[%s3] sm:$0x1]
    %v107 = vlaneseq
    %v108 = vshrl.u32 %v107, 7
    %v109 = vsub.s32 0, %v108
    %v110 = vrot.slane %v105, %v109
    %vm112 = vcmask 261120
    %v114 = vsel %vm112, %v95, 0
    %v117 = vsel %vm112, %v96, 0
    %119 = vmatprep.subr.mxu0 0.0
    %120 = vmatpush1.msra.mxu0 %v97
    %121 = vmatprep.subr.mxu0 0.0
    %122 = vmatpush1.msra.mxu0 %v98
    %123 = vmatprep.subr.mxu0 0.0
    %124 = vmatpush1.msra.mxu0 %v99
    %125 = vmatprep.subr.mxu0 0.0
    %126 = vmatpush1.msra.mxu0 %v100
    %127 = vmatprep.subr.mxu0 0.0
    %128 = vmatpush1.msra.mxu0 0.0
    %129 = vmatprep.subr.mxu0 0.0
    %130 = vmatpush1.msra.mxu0 0.0
    %131 = vmatprep.subr.mxu0 0.0
    %132 = vmatpush1.msra.mxu0 0.0
    %133 = vmatprep.subr.mxu0 0.0
    %134 = vmatpush1.msra.mxu0 0.0
    %135 = vmatprep.subr.mxu0 0.0
    %136 = vmatpush1.msra.mxu0 0.0
    %137 = vmatprep.subr.mxu0 0.0
    %138 = vmatpush1.msra.mxu0 0.0
    %139 = vmatprep.subr.mxu0 0.0
    %140 = vmatpush1.msra.mxu0 0.0
    %141 = vmatprep.subr.mxu0 0.0
    %142 = vmatpush1.msra.mxu0 0.0
    %143 = vmatprep.subr.mxu0 0.0
    %144 = vmatpush1.msra.mxu0 0.0
    %145 = vmatprep.subr.mxu0 0.0
    %146 = vmatpush1.msra.mxu0 0.0
    %147 = vmatprep.subr.mxu0 0.0
    %148 = vmatpush1.msra.mxu0 0.0
    %149 = vmatprep.subr.mxu0 0.0
    %150 = vmatpush1.msra.mxu0 0.0
    %151 = vmatprep.subr.mxu0 0.0
    %152 = vmatpush1.msra.mxu0 0.0
    %153 = vmatprep.subr.mxu0 0.0
    %154 = vmatpush1.msra.mxu0 0.0
    %155 = vmatprep.subr.mxu0 0.0
    %156 = vmatpush1.msra.mxu0 0.0
    %157 = vmatprep.subr.mxu0 0.0
    %158 = vmatpush1.msra.mxu0 0.0
    %159 = vmatprep.subr.mxu0 0.0
    %160 = vmatpush1.msra.mxu0 0.0
    %161 = vmatprep.subr.mxu0 0.0
    %162 = vmatpush1.msra.mxu0 0.0
    %163 = vmatprep.subr.mxu0 0.0
    %164 = vmatpush1.msra.mxu0 0.0
    %165 = vmatprep.subr.mxu0 0.0
    %166 = vmatpush1.msra.mxu0 0.0
    %167 = vmatprep.subr.mxu0 0.0
    %168 = vmatpush1.msra.mxu0 0.0
    %169 = vmatprep.subr.mxu0 0.0
    %170 = vmatpush1.msra.mxu0 0.0
    %171 = vmatprep.subr.mxu0 0.0
    %172 = vmatpush1.msra.mxu0 0.0
    %173 = vmatprep.subr.mxu0 0.0
    %174 = vmatpush1.msra.mxu0 0.0
    %175 = vmatprep.subr.mxu0 0.0
    %176 = vmatpush1.msra.mxu0 0.0
    %177 = vmatprep.subr.mxu0 0.0
    %178 = vmatpush1.msra.mxu0 0.0
    %179 = vmatprep.subr.mxu0 0.0
    %180 = vmatpush1.msra.mxu0 0.0
    %181 = vmatprep.subr.mxu0 0.0
    %182 = vmatpush1.msra.mxu0 0.0
    %183 = vmatprep.mubr.f32.mxu0 0.0
    %184 = vmatmul.mubr.f32.gmra.mrb[0].mxu0 %v114
    %v185 = vpop.f32.mrb[0].mxu0
    %v186 = vadd.f32 %v110, %v185
    %v187 = vpop.f32.mrb[0].mxu0
    %188 = vmatprep.mubr.f32.mxu0 0.0
    %189 = vmatmul.mubr.f32.gmra.mrb[0].mxu0 %v117
    %v190 = vpop.f32.mrb[0].mxu0
    %v191 = vadd.f32 %v110, %v190
    %v192 = vpop.f32.mrb[0].mxu0
    %193 = vdwg.mxu0
    %v195 = vsel %vm112, 0.0, 0
    %197 = vmatprep.subr.mxu0 0.0
    %198 = vmatpush1.msra.mxu0 %v101
    %199 = vmatprep.subr.mxu0 0.0
    %200 = vmatpush1.msra.mxu0 %v102
    %201 = vmatprep.subr.mxu0 0.0
    %202 = vmatpush1.msra.mxu0 %v103
    %203 = vmatprep.subr.mxu0 0.0
    %204 = vmatpush1.msra.mxu0 %v104
    %205 = vmatprep.subr.mxu0 0.0
    %206 = vmatpush1.msra.mxu0 0.0
    %207 = vmatprep.subr.mxu0 0.0
    %208 = vmatpush1.msra.mxu0 0.0
    %209 = vmatprep.subr.mxu0 0.0
    %210 = vmatpush1.msra.mxu0 0.0
    %211 = vmatprep.subr.mxu0 0.0
    %212 = vmatpush1.msra.mxu0 0.0
    %213 = vmatprep.subr.mxu0 0.0
    %214 = vmatpush1.msra.mxu0 0.0
    %215 = vmatprep.subr.mxu0 0.0
    %216 = vmatpush1.msra.mxu0 0.0
    %217 = vmatprep.subr.mxu0 0.0
    %218 = vmatpush1.msra.mxu0 0.0
    %219 = vmatprep.subr.mxu0 0.0
    %220 = vmatpush1.msra.mxu0 0.0
    %221 = vmatprep.subr.mxu0 0.0
    %222 = vmatpush1.msra.mxu0 0.0
    %223 = vmatprep.subr.mxu0 0.0
    %224 = vmatpush1.msra.mxu0 0.0
    %225 = vmatprep.subr.mxu0 0.0
    %226 = vmatpush1.msra.mxu0 0.0
    %227 = vmatprep.subr.mxu0 0.0
    %228 = vmatpush1.msra.mxu0 0.0
    %229 = vmatprep.subr.mxu0 0.0
    %230 = vmatpush1.msra.mxu0 0.0
    %231 = vmatprep.subr.mxu0 0.0
    %232 = vmatpush1.msra.mxu0 0.0
    %233 = vmatprep.subr.mxu0 0.0
    %234 = vmatpush1.msra.mxu0 0.0
    %235 = vmatprep.subr.mxu0 0.0
    %236 = vmatpush1.msra.mxu0 0.0
    %237 = vmatprep.subr.mxu0 0.0
    %238 = vmatpush1.msra.mxu0 0.0
    %239 = vmatprep.subr.mxu0 0.0
    %240 = vmatpush1.msra.mxu0 0.0
    %241 = vmatprep.subr.mxu0 0.0
    %242 = vmatpush1.msra.mxu0 0.0
    %243 = vmatprep.subr.mxu0 0.0
    %244 = vmatpush1.msra.mxu0 0.0
    %245 = vmatprep.subr.mxu0 0.0
    %246 = vmatpush1.msra.mxu0 0.0
    %247 = vmatprep.subr.mxu0 0.0
    %248 = vmatpush1.msra.mxu0 0.0
    %249 = vmatprep.subr.mxu0 0.0
    %250 = vmatpush1.msra.mxu0 0.0
    %251 = vmatprep.subr.mxu0 0.0
    %252 = vmatpush1.msra.mxu0 0.0
    %253 = vmatprep.subr.mxu0 0.0
    %254 = vmatpush1.msra.mxu0 0.0
    %255 = vmatprep.subr.mxu0 0.0
    %256 = vmatpush1.msra.mxu0 0.0
    %257 = vmatprep.subr.mxu0 0.0
    %258 = vmatpush1.msra.mxu0 0.0
    %259 = vmatprep.subr.mxu0 0.0
    %260 = vmatpush1.msra.mxu0 0.0
    %261 = vmatprep.mubr.f32.mxu0 0.0
    %262 = vmatmul.mubr.f32.gmra.mrb[0].mxu0 %v195
    %v263 = vpop.f32.mrb[0].mxu0
    %v264 = vadd.f32 0.0, %v263
    %v265 = vpop.f32.mrb[0].mxu0
    %266 = vdwg.mxu0
    %v267 = vadd.f32 %v186, %v264
    %v268 = vxor.u32 %v267, 2147483648
    %v269 = vmul.f32 %v268, 1.442695
    %v270 = vpow.pop %v269
    %v271 = vadd.f32 %v270, 1.0
    %v272 = vrcp.pop %v271
    %v273 = vmul.f32 1.0, %v272
    %v274 = vtanh.pop %v267
    %v275 = vmul.f32 %v273, 0.0
    %277 = vrot.lane.b32.xlu0 %v274, 64
    %v278 = vpop.permute.xlu0 %277
    %v280 = vmul.f32 %v273, %v278
    %282 = vrot.lane.b32.xlu0 %v280, 32
    %v283 = vpop.permute.xlu0 %282
    %v285 = vadd.f32 %v275, %v283
    %v286 = vtanh.pop %v285
    %288 = vrot.lane.b32.xlu0 %v286, 64
    %v289 = vpop.permute.xlu0 %288
    %v291 = vmul.f32 %v273, %v289
    %293 = vrot.lane.b32.xlu0 %v291, 32
    %v294 = vpop.permute.xlu0 %293
    %vm296 = vcmask 254976
    %297 = vst.msk [vmem:[#allocation2] sm:$0x3] %vm296, %v294
    %v298 = vsel %vm112, %v294, 0
    %300 = vmatprep.subr.mxu0 0.0
    %301 = vmatpush1.msra.mxu0 %v101
    %302 = vmatprep.subr.mxu0 0.0
    %303 = vmatpush1.msra.mxu0 %v102
    %304 = vmatprep.subr.mxu0 0.0
    %305 = vmatpush1.msra.mxu0 %v103
    %306 = vmatprep.subr.mxu0 0.0
    %307 = vmatpush1.msra.mxu0 %v104
    %308 = vmatprep.subr.mxu0 0.0
    %309 = vmatpush1.msra.mxu0 0.0
    %310 = vmatprep.subr.mxu0 0.0
    %311 = vmatpush1.msra.mxu0 0.0
    %312 = vmatprep.subr.mxu0 0.0
    %313 = vmatpush1.msra.mxu0 0.0
    %314 = vmatprep.subr.mxu0 0.0
    %315 = vmatpush1.msra.mxu0 0.0
    %316 = vmatprep.subr.mxu0 0.0
    %317 = vmatpush1.msra.mxu0 0.0
    %318 = vmatprep.subr.mxu0 0.0
    %319 = vmatpush1.msra.mxu0 0.0
    %320 = vmatprep.subr.mxu0 0.0
    %321 = vmatpush1.msra.mxu0 0.0
    %322 = vmatprep.subr.mxu0 0.0
    %323 = vmatpush1.msra.mxu0 0.0
    %324 = vmatprep.subr.mxu0 0.0
    %325 = vmatpush1.msra.mxu0 0.0
    %326 = vmatprep.subr.mxu0 0.0
    %327 = vmatpush1.msra.mxu0 0.0
    %328 = vmatprep.subr.mxu0 0.0
    %329 = vmatpush1.msra.mxu0 0.0
    %330 = vmatprep.subr.mxu0 0.0
    %331 = vmatpush1.msra.mxu0 0.0
    %332 = vmatprep.subr.mxu0 0.0
    %333 = vmatpush1.msra.mxu0 0.0
    %334 = vmatprep.subr.mxu0 0.0
    %335 = vmatpush1.msra.mxu0 0.0
    %336 = vmatprep.subr.mxu0 0.0
    %337 = vmatpush1.msra.mxu0 0.0
    %338 = vmatprep.subr.mxu0 0.0
    %339 = vmatpush1.msra.mxu0 0.0
    %340 = vmatprep.subr.mxu0 0.0
    %341 = vmatpush1.msra.mxu0 0.0
    %342 = vmatprep.subr.mxu0 0.0
    %343 = vmatpush1.msra.mxu0 0.0
    %344 = vmatprep.subr.mxu0 0.0
    %345 = vmatpush1.msra.mxu0 0.0
    %346 = vmatprep.subr.mxu0 0.0
    %347 = vmatpush1.msra.mxu0 0.0
    %348 = vmatprep.subr.mxu0 0.0
    %349 = vmatpush1.msra.mxu0 0.0
    %350 = vmatprep.subr.mxu0 0.0
    %351 = vmatpush1.msra.mxu0 0.0
    %352 = vmatprep.subr.mxu0 0.0
    %353 = vmatpush1.msra.mxu0 0.0
    %354 = vmatprep.subr.mxu0 0.0
    %355 = vmatpush1.msra.mxu0 0.0
    %356 = vmatprep.subr.mxu0 0.0
    %357 = vmatpush1.msra.mxu0 0.0
    %358 = vmatprep.subr.mxu0 0.0
    %359 = vmatpush1.msra.mxu0 0.0
    %360 = vmatprep.subr.mxu0 0.0
    %361 = vmatpush1.msra.mxu0 0.0
    %362 = vmatprep.subr.mxu0 0.0
    %363 = vmatpush1.msra.mxu0 0.0
    %364 = vmatprep.mubr.f32.mxu0 0.0
    %365 = vmatmul.mubr.f32.gmra.mrb[0].mxu0 %v298
    %v366 = vpop.f32.mrb[0].mxu0
    %v367 = vadd.f32 0.0, %v366
    %v368 = vpop.f32.mrb[0].mxu0
    %369 = vdwg.mxu0
    %v371 = vrot.slane %v367, 6
    %v373 = vadd.f32 %v186, %v371
    %v374 = vxor.u32 %v373, 2147483648
    %v375 = vmul.f32 %v374, 1.442695
    %v376 = vpow.pop %v375
    %v377 = vadd.f32 %v376, 1.0
    %v378 = vrcp.pop %v377
    %v379 = vmul.f32 1.0, %v378
    %v380 = vtanh.pop %v373
    %v382 = vrot.slane %v285, 6
    %v384 = vmul.f32 %v379, %v382
    %386 = vrot.lane.b32.xlu0 %v380, 64
    %v387 = vpop.permute.xlu0 %386
    %v389 = vmul.f32 %v379, %v387
    %391 = vrot.lane.b32.xlu0 %v389, 32
    %v392 = vpop.permute.xlu0 %391
    %v394 = vadd.f32 %v384, %v392
    %v395 = vtanh.pop %v394
    %397 = vrot.lane.b32.xlu0 %v395, 64
    %v398 = vpop.permute.xlu0 %397
    %v400 = vmul.f32 %v379, %v398
    %402 = vrot.lane.b32.xlu0 %v400, 32
    %v403 = vpop.permute.xlu0 %402
    %vm405 = vcmask 257026
    %406 = vst.msk [vmem:[#allocation2] sm:$0xc] %vm405, %v403
    %v407 = vrot.slane %v400, 2
    %408 = vrot.lane.b32.xlu0 %v407, 32
    %v409 = vpop.permute.xlu0 %408
    %v410 = vsel %vm112, %v409, 0
    %412 = vmatprep.subr.mxu0 0.0
    %413 = vmatpush1.msra.mxu0 %v101
    %414 = vmatprep.subr.mxu0 0.0
    %415 = vmatpush1.msra.mxu0 %v102
    %416 = vmatprep.subr.mxu0 0.0
    %417 = vmatpush1.msra.mxu0 %v103
    %418 = vmatprep.subr.mxu0 0.0
    %419 = vmatpush1.msra.mxu0 %v104
    %420 = vmatprep.subr.mxu0 0.0
    %421 = vmatpush1.msra.mxu0 0.0
    %422 = vmatprep.subr.mxu0 0.0
    %423 = vmatpush1.msra.mxu0 0.0
    %424 = vmatprep.subr.mxu0 0.0
    %425 = vmatpush1.msra.mxu0 0.0
    %426 = vmatprep.subr.mxu0 0.0
    %427 = vmatpush1.msra.mxu0 0.0
    %428 = vmatprep.subr.mxu0 0.0
    %429 = vmatpush1.msra.mxu0 0.0
    %430 = vmatprep.subr.mxu0 0.0
    %431 = vmatpush1.msra.mxu0 0.0
    %432 = vmatprep.subr.mxu0 0.0
    %433 = vmatpush1.msra.mxu0 0.0
    %434 = vmatprep.subr.mxu0 0.0
    %435 = vmatpush1.msra.mxu0 0.0
    %436 = vmatprep.subr.mxu0 0.0
    %437 = vmatpush1.msra.mxu0 0.0
    %438 = vmatprep.subr.mxu0 0.0
    %439 = vmatpush1.msra.mxu0 0.0
    %440 = vmatprep.subr.mxu0 0.0
    %441 = vmatpush1.msra.mxu0 0.0
    %442 = vmatprep.subr.mxu0 0.0
    %443 = vmatpush1.msra.mxu0 0.0
    %444 = vmatprep.subr.mxu0 0.0
    %445 = vmatpush1.msra.mxu0 0.0
    %446 = vmatprep.subr.mxu0 0.0
    %447 = vmatpush1.msra.mxu0 0.0
    %448 = vmatprep.subr.mxu0 0.0
    %449 = vmatpush1.msra.mxu0 0.0
    %450 = vmatprep.subr.mxu0 0.0
    %451 = vmatpush1.msra.mxu0 0.0
    %452 = vmatprep.subr.mxu0 0.0
    %453 = vmatpush1.msra.mxu0 0.0
    %454 = vmatprep.subr.mxu0 0.0
    %455 = vmatpush1.msra.mxu0 0.0
    %456 = vmatprep.subr.mxu0 0.0
    %457 = vmatpush1.msra.mxu0 0.0
    %458 = vmatprep.subr.mxu0 0.0
    %459 = vmatpush1.msra.mxu0 0.0
    %460 = vmatprep.subr.mxu0 0.0
    %461 = vmatpush1.msra.mxu0 0.0
    %462 = vmatprep.subr.mxu0 0.0
    %463 = vmatpush1.msra.mxu0 0.0
    %464 = vmatprep.subr.mxu0 0.0
    %465 = vmatpush1.msra.mxu0 0.0
    %466 = vmatprep.subr.mxu0 0.0
    %467 = vmatpush1.msra.mxu0 0.0
    %468 = vmatprep.subr.mxu0 0.0
    %469 = vmatpush1.msra.mxu0 0.0
    %470 = vmatprep.subr.mxu0 0.0
    %471 = vmatpush1.msra.mxu0 0.0
    %472 = vmatprep.subr.mxu0 0.0
    %473 = vmatpush1.msra.mxu0 0.0
    %474 = vmatprep.subr.mxu0 0.0
    %475 = vmatpush1.msra.mxu0 0.0
    %476 = vmatprep.mubr.f32.mxu0 0.0
    %477 = vmatmul.mubr.f32.gmra.mrb[0].mxu0 %v410
    %v478 = vpop.f32.mrb[0].mxu0
    %v479 = vadd.f32 0.0, %v478
    %v480 = vpop.f32.mrb[0].mxu0
    %481 = vdwg.mxu0
    %v483 = vrot.slane %v479, 4
    %v485 = vadd.f32 %v186, %v483
    %v486 = vxor.u32 %v485, 2147483648
    %v487 = vmul.f32 %v486, 1.442695
    %v488 = vpow.pop %v487
    %v489 = vadd.f32 %v488, 1.0
    %v490 = vrcp.pop %v489
    %v491 = vmul.f32 1.0, %v490
    %v492 = vtanh.pop %v485
    %v494 = vrot.slane %v394, 6
    %v496 = vmul.f32 %v491, %v494
    %498 = vrot.lane.b32.xlu0 %v492, 64
    %v499 = vpop.permute.xlu0 %498
    %v501 = vmul.f32 %v491, %v499
    %503 = vrot.lane.b32.xlu0 %v501, 32
    %v504 = vpop.permute.xlu0 %503
    %v506 = vadd.f32 %v496, %v504
    %v507 = vtanh.pop %v506
    %509 = vrot.lane.b32.xlu0 %v507, 64
    %v510 = vpop.permute.xlu0 %509
    %v512 = vmul.f32 %v491, %v510
    %514 = vrot.lane.b32.xlu0 %v512, 32
    %v515 = vpop.permute.xlu0 %514
    %vm517 = vcmask 259076
    %518 = vst.msk [vmem:[#allocation2] sm:$0x30] %vm517, %v515
    %v519 = vrot.slane %v512, 4
    %520 = vrot.lane.b32.xlu0 %v519, 32
    %v521 = vpop.permute.xlu0 %520
    %v522 = vsel %vm112, %v521, 0
    %524 = vmatprep.subr.mxu0 0.0
    %525 = vmatpush1.msra.mxu0 %v101
    %526 = vmatprep.subr.mxu0 0.0
    %527 = vmatpush1.msra.mxu0 %v102
    %528 = vmatprep.subr.mxu0 0.0
    %529 = vmatpush1.msra.mxu0 %v103
    %530 = vmatprep.subr.mxu0 0.0
    %531 = vmatpush1.msra.mxu0 %v104
    %532 = vmatprep.subr.mxu0 0.0
    %533 = vmatpush1.msra.mxu0 0.0
    %534 = vmatprep.subr.mxu0 0.0
    %535 = vmatpush1.msra.mxu0 0.0
    %536 = vmatprep.subr.mxu0 0.0
    %537 = vmatpush1.msra.mxu0 0.0
    %538 = vmatprep.subr.mxu0 0.0
    %539 = vmatpush1.msra.mxu0 0.0
    %540 = vmatprep.subr.mxu0 0.0
    %541 = vmatpush1.msra.mxu0 0.0
    %542 = vmatprep.subr.mxu0 0.0
    %543 = vmatpush1.msra.mxu0 0.0
    %544 = vmatprep.subr.mxu0 0.0
    %545 = vmatpush1.msra.mxu0 0.0
    %546 = vmatprep.subr.mxu0 0.0
    %547 = vmatpush1.msra.mxu0 0.0
    %548 = vmatprep.subr.mxu0 0.0
    %549 = vmatpush1.msra.mxu0 0.0
    %550 = vmatprep.subr.mxu0 0.0
    %551 = vmatpush1.msra.mxu0 0.0
    %552 = vmatprep.subr.mxu0 0.0
    %553 = vmatpush1.msra.mxu0 0.0
    %554 = vmatprep.subr.mxu0 0.0
    %555 = vmatpush1.msra.mxu0 0.0
    %556 = vmatprep.subr.mxu0 0.0
    %557 = vmatpush1.msra.mxu0 0.0
    %558 = vmatprep.subr.mxu0 0.0
    %559 = vmatpush1.msra.mxu0 0.0
    %560 = vmatprep.subr.mxu0 0.0
    %561 = vmatpush1.msra.mxu0 0.0
    %562 = vmatprep.subr.mxu0 0.0
    %563 = vmatpush1.msra.mxu0 0.0
    %564 = vmatprep.subr.mxu0 0.0
    %565 = vmatpush1.msra.mxu0 0.0
    %566 = vmatprep.subr.mxu0 0.0
    %567 = vmatpush1.msra.mxu0 0.0
    %568 = vmatprep.subr.mxu0 0.0
    %569 = vmatpush1.msra.mxu0 0.0
    %570 = vmatprep.subr.mxu0 0.0
    %571 = vmatpush1.msra.mxu0 0.0
    %572 = vmatprep.subr.mxu0 0.0
    %573 = vmatpush1.msra.mxu0 0.0
    %574 = vmatprep.subr.mxu0 0.0
    %575 = vmatpush1.msra.mxu0 0.0
    %576 = vmatprep.subr.mxu0 0.0
    %577 = vmatpush1.msra.mxu0 0.0
    %578 = vmatprep.subr.mxu0 0.0
    %579 = vmatpush1.msra.mxu0 0.0
    %580 = vmatprep.subr.mxu0 0.0
    %581 = vmatpush1.msra.mxu0 0.0
    %582 = vmatprep.subr.mxu0 0.0
    %583 = vmatpush1.msra.mxu0 0.0
    %584 = vmatprep.subr.mxu0 0.0
    %585 = vmatpush1.msra.mxu0 0.0
    %586 = vmatprep.subr.mxu0 0.0
    %587 = vmatpush1.msra.mxu0 0.0
    %588 = vmatprep.mubr.f32.mxu0 0.0
    %589 = vmatmul.mubr.f32.gmra.mrb[0].mxu0 %v522
    %v590 = vpop.f32.mrb[0].mxu0
    %v591 = vadd.f32 0.0, %v590
    %v592 = vpop.f32.mrb[0].mxu0
    %593 = vdwg.mxu0
    %v595 = vrot.slane %v591, 2
    %v597 = vadd.f32 %v186, %v595
    %v598 = vxor.u32 %v597, 2147483648
    %v599 = vmul.f32 %v598, 1.442695
    %v600 = vpow.pop %v599
    %v601 = vadd.f32 %v600, 1.0
    %v602 = vrcp.pop %v601
    %v603 = vmul.f32 1.0, %v602
    %v604 = vtanh.pop %v597
    %v606 = vrot.slane %v506, 6
    %v608 = vmul.f32 %v603, %v606
    %610 = vrot.lane.b32.xlu0 %v604, 64
    %v611 = vpop.permute.xlu0 %610
    %v613 = vmul.f32 %v603, %v611
    %615 = vrot.lane.b32.xlu0 %v613, 32
    %v616 = vpop.permute.xlu0 %615
    %v618 = vadd.f32 %v608, %v616
    %v619 = vtanh.pop %v618
    %621 = vrot.lane.b32.xlu0 %v619, 64
    %v622 = vpop.permute.xlu0 %621
    %v624 = vmul.f32 %v603, %v622
    %626 = vrot.lane.b32.xlu0 %v624, 32
    %v627 = vpop.permute.xlu0 %626
    %vm629 = vcmask 261126
    %630 = vst.msk [vmem:[#allocation2] sm:$0xc0] %vm629, %v627
    %v631 = vrot.slane %v624, 6
    %632 = vrot.lane.b32.xlu0 %v631, 32
    %v633 = vpop.permute.xlu0 %632
    %v634 = vsel %vm112, %v633, 0
    %636 = vmatprep.subr.mxu0 0.0
    %637 = vmatpush1.msra.mxu0 %v101
    %638 = vmatprep.subr.mxu0 0.0
    %639 = vmatpush1.msra.mxu0 %v102
    %640 = vmatprep.subr.mxu0 0.0
    %641 = vmatpush1.msra.mxu0 %v103
    %642 = vmatprep.subr.mxu0 0.0
    %643 = vmatpush1.msra.mxu0 %v104
    %644 = vmatprep.subr.mxu0 0.0
    %645 = vmatpush1.msra.mxu0 0.0
    %646 = vmatprep.subr.mxu0 0.0
    %647 = vmatpush1.msra.mxu0 0.0
    %648 = vmatprep.subr.mxu0 0.0
    %649 = vmatpush1.msra.mxu0 0.0
    %650 = vmatprep.subr.mxu0 0.0
    %651 = vmatpush1.msra.mxu0 0.0
    %652 = vmatprep.subr.mxu0 0.0
    %653 = vmatpush1.msra.mxu0 0.0
    %654 = vmatprep.subr.mxu0 0.0
    %655 = vmatpush1.msra.mxu0 0.0
    %656 = vmatprep.subr.mxu0 0.0
    %657 = vmatpush1.msra.mxu0 0.0
    %658 = vmatprep.subr.mxu0 0.0
    %659 = vmatpush1.msra.mxu0 0.0
    %660 = vmatprep.subr.mxu0 0.0
    %661 = vmatpush1.msra.mxu0 0.0
    %662 = vmatprep.subr.mxu0 0.0
    %663 = vmatpush1.msra.mxu0 0.0
    %664 = vmatprep.subr.mxu0 0.0
    %665 = vmatpush1.msra.mxu0 0.0
    %666 = vmatprep.subr.mxu0 0.0
    %667 = vmatpush1.msra.mxu0 0.0
    %668 = vmatprep.subr.mxu0 0.0
    %669 = vmatpush1.msra.mxu0 0.0
    %670 = vmatprep.subr.mxu0 0.0
    %671 = vmatpush1.msra.mxu0 0.0
    %672 = vmatprep.subr.mxu0 0.0
    %673 = vmatpush1.msra.mxu0 0.0
    %674 = vmatprep.subr.mxu0 0.0
    %675 = vmatpush1.msra.mxu0 0.0
    %676 = vmatprep.subr.mxu0 0.0
    %677 = vmatpush1.msra.mxu0 0.0
    %678 = vmatprep.subr.mxu0 0.0
    %679 = vmatpush1.msra.mxu0 0.0
    %680 = vmatprep.subr.mxu0 0.0
    %681 = vmatpush1.msra.mxu0 0.0
    %682 = vmatprep.subr.mxu0 0.0
    %683 = vmatpush1.msra.mxu0 0.0
    %684 = vmatprep.subr.mxu0 0.0
    %685 = vmatpush1.msra.mxu0 0.0
    %686 = vmatprep.subr.mxu0 0.0
    %687 = vmatpush1.msra.mxu0 0.0
    %688 = vmatprep.subr.mxu0 0.0
    %689 = vmatpush1.msra.mxu0 0.0
    %690 = vmatprep.subr.mxu0 0.0
    %691 = vmatpush1.msra.mxu0 0.0
    %692 = vmatprep.subr.mxu0 0.0
    %693 = vmatpush1.msra.mxu0 0.0
    %694 = vmatprep.subr.mxu0 0.0
    %695 = vmatpush1.msra.mxu0 0.0
    %696 = vmatprep.subr.mxu0 0.0
    %697 = vmatpush1.msra.mxu0 0.0
    %698 = vmatprep.subr.mxu0 0.0
    %699 = vmatpush1.msra.mxu0 0.0
    %700 = vmatprep.mubr.f32.mxu0 0.0
    %701 = vmatmul.mubr.f32.gmra.mrb[0].mxu0 %v634
    %v702 = vpop.f32.mrb[0].mxu0
    %v703 = vadd.f32 0.0, %v702
    %v704 = vpop.f32.mrb[0].mxu0
    %705 = vdwg.mxu0
    %v706 = vadd.f32 %v191, %v703
    %v707 = vxor.u32 %v706, 2147483648
    %v708 = vmul.f32 %v707, 1.442695
    %v709 = vpow.pop %v708
    %v710 = vadd.f32 %v709, 1.0
    %v711 = vrcp.pop %v710
    %v712 = vmul.f32 1.0, %v711
    %v713 = vtanh.pop %v706
    %v715 = vrot.slane %v618, 6
    %v717 = vmul.f32 %v712, %v715
    %719 = vrot.lane.b32.xlu0 %v713, 64
    %v720 = vpop.permute.xlu0 %719
    %v722 = vmul.f32 %v712, %v720
    %724 = vrot.lane.b32.xlu0 %v722, 32
    %v725 = vpop.permute.xlu0 %724
    %v727 = vadd.f32 %v717, %v725
    %v728 = vtanh.pop %v727
    %730 = vrot.lane.b32.xlu0 %v728, 64
    %v731 = vpop.permute.xlu0 %730
    %v733 = vmul.f32 %v712, %v731
    %735 = vrot.lane.b32.xlu0 %v733, 32
    %v736 = vpop.permute.xlu0 %735
    %738 = vst.msk [vmem:[#allocation2 + $0x8] sm:$0x3] %vm296, %v736
    %v739 = vsel %vm112, %v736, 0
    %741 = vmatprep.subr.mxu0 0.0
    %742 = vmatpush1.msra.mxu0 %v101
    %743 = vmatprep.subr.mxu0 0.0
    %744 = vmatpush1.msra.mxu0 %v102
    %745 = vmatprep.subr.mxu0 0.0
    %746 = vmatpush1.msra.mxu0 %v103
    %747 = vmatprep.subr.mxu0 0.0
    %748 = vmatpush1.msra.mxu0 %v104
    %749 = vmatprep.subr.mxu0 0.0
    %750 = vmatpush1.msra.mxu0 0.0
    %751 = vmatprep.subr.mxu0 0.0
    %752 = vmatpush1.msra.mxu0 0.0
    %753 = vmatprep.subr.mxu0 0.0
    %754 = vmatpush1.msra.mxu0 0.0
    %755 = vmatprep.subr.mxu0 0.0
    %756 = vmatpush1.msra.mxu0 0.0
    %757 = vmatprep.subr.mxu0 0.0
    %758 = vmatpush1.msra.mxu0 0.0
    %759 = vmatprep.subr.mxu0 0.0
    %760 = vmatpush1.msra.mxu0 0.0
    %761 = vmatprep.subr.mxu0 0.0
    %762 = vmatpush1.msra.mxu0 0.0
    %763 = vmatprep.subr.mxu0 0.0
    %764 = vmatpush1.msra.mxu0 0.0
    %765 = vmatprep.subr.mxu0 0.0
    %766 = vmatpush1.msra.mxu0 0.0
    %767 = vmatprep.subr.mxu0 0.0
    %768 = vmatpush1.msra.mxu0 0.0
    %769 = vmatprep.subr.mxu0 0.0
    %770 = vmatpush1.msra.mxu0 0.0
    %771 = vmatprep.subr.mxu0 0.0
    %772 = vmatpush1.msra.mxu0 0.0
    %773 = vmatprep.subr.mxu0 0.0
    %774 = vmatpush1.msra.mxu0 0.0
    %775 = vmatprep.subr.mxu0 0.0
    %776 = vmatpush1.msra.mxu0 0.0
    %777 = vmatprep.subr.mxu0 0.0
    %778 = vmatpush1.msra.mxu0 0.0
    %779 = vmatprep.subr.mxu0 0.0
    %780 = vmatpush1.msra.mxu0 0.0
    %781 = vmatprep.subr.mxu0 0.0
    %782 = vmatpush1.msra.mxu0 0.0
    %783 = vmatprep.subr.mxu0 0.0
    %784 = vmatpush1.msra.mxu0 0.0
    %785 = vmatprep.subr.mxu0 0.0
    %786 = vmatpush1.msra.mxu0 0.0
    %787 = vmatprep.subr.mxu0 0.0
    %788 = vmatpush1.msra.mxu0 0.0
    %789 = vmatprep.subr.mxu0 0.0
    %790 = vmatpush1.msra.mxu0 0.0
    %791 = vmatprep.subr.mxu0 0.0
    %792 = vmatpush1.msra.mxu0 0.0
    %793 = vmatprep.subr.mxu0 0.0
    %794 = vmatpush1.msra.mxu0 0.0
    %795 = vmatprep.subr.mxu0 0.0
    %796 = vmatpush1.msra.mxu0 0.0
    %797 = vmatprep.subr.mxu0 0.0
    %798 = vmatpush1.msra.mxu0 0.0
    %799 = vmatprep.subr.mxu0 0.0
    %800 = vmatpush1.msra.mxu0 0.0
    %801 = vmatprep.subr.mxu0 0.0
    %802 = vmatpush1.msra.mxu0 0.0
    %803 = vmatprep.subr.mxu0 0.0
    %804 = vmatpush1.msra.mxu0 0.0
    %805 = vmatprep.mubr.f32.mxu0 0.0
    %806 = vmatmul.mubr.f32.gmra.mrb[0].mxu0 %v739
    %v807 = vpop.f32.mrb[0].mxu0
    %v808 = vadd.f32 0.0, %v807
    %v809 = vpop.f32.mrb[0].mxu0
    %810 = vdwg.mxu0
    %v812 = vrot.slane %v808, 6
    %v814 = vadd.f32 %v191, %v812
    %v815 = vxor.u32 %v814, 2147483648
    %v816 = vmul.f32 %v815, 1.442695
    %v817 = vpow.pop %v816
    %v818 = vadd.f32 %v817, 1.0
    %v819 = vrcp.pop %v818
    %v820 = vmul.f32 1.0, %v819
    %v821 = vtanh.pop %v814
    %v823 = vrot.slane %v727, 6
    %v825 = vmul.f32 %v820, %v823
    %827 = vrot.lane.b32.xlu0 %v821, 64
    %v828 = vpop.permute.xlu0 %827
    %v830 = vmul.f32 %v820, %v828
    %832 = vrot.lane.b32.xlu0 %v830, 32
    %v833 = vpop.permute.xlu0 %832
    %v835 = vadd.f32 %v825, %v833
    %v836 = vtanh.pop %v835
    %838 = vrot.lane.b32.xlu0 %v836, 64
    %v839 = vpop.permute.xlu0 %838
    %v841 = vmul.f32 %v820, %v839
    %843 = vrot.lane.b32.xlu0 %v841, 32
    %v844 = vpop.permute.xlu0 %843
    %846 = vst.msk [vmem:[#allocation2 + $0x8] sm:$0xc] %vm405, %v844
    %v847 = vrot.slane %v841, 2
    %848 = vrot.lane.b32.xlu0 %v847, 32
    %v849 = vpop.permute.xlu0 %848
    %v850 = vsel %vm112, %v849, 0
    %852 = vmatprep.subr.mxu0 0.0
    %853 = vmatpush1.msra.mxu0 %v101
    %854 = vmatprep.subr.mxu0 0.0
    %855 = vmatpush1.msra.mxu0 %v102
    %856 = vmatprep.subr.mxu0 0.0
    %857 = vmatpush1.msra.mxu0 %v103
    %858 = vmatprep.subr.mxu0 0.0
    %859 = vmatpush1.msra.mxu0 %v104
    %860 = vmatprep.subr.mxu0 0.0
    %861 = vmatpush1.msra.mxu0 0.0
    %862 = vmatprep.subr.mxu0 0.0
    %863 = vmatpush1.msra.mxu0 0.0
    %864 = vmatprep.subr.mxu0 0.0
    %865 = vmatpush1.msra.mxu0 0.0
    %866 = vmatprep.subr.mxu0 0.0
    %867 = vmatpush1.msra.mxu0 0.0
    %868 = vmatprep.subr.mxu0 0.0
    %869 = vmatpush1.msra.mxu0 0.0
    %870 = vmatprep.subr.mxu0 0.0
    %871 = vmatpush1.msra.mxu0 0.0
    %872 = vmatprep.subr.mxu0 0.0
    %873 = vmatpush1.msra.mxu0 0.0
    %874 = vmatprep.subr.mxu0 0.0
    %875 = vmatpush1.msra.mxu0 0.0
    %876 = vmatprep.subr.mxu0 0.0
    %877 = vmatpush1.msra.mxu0 0.0
    %878 = vmatprep.subr.mxu0 0.0
    %879 = vmatpush1.msra.mxu0 0.0
    %880 = vmatprep.subr.mxu0 0.0
    %881 = vmatpush1.msra.mxu0 0.0
    %882 = vmatprep.subr.mxu0 0.0
    %883 = vmatpush1.msra.mxu0 0.0
    %884 = vmatprep.subr.mxu0 0.0
    %885 = vmatpush1.msra.mxu0 0.0
    %886 = vmatprep.subr.mxu0 0.0
    %887 = vmatpush1.msra.mxu0 0.0
    %888 = vmatprep.subr.mxu0 0.0
    %889 = vmatpush1.msra.mxu0 0.0
    %890 = vmatprep.subr.mxu0 0.0
    %891 = vmatpush1.msra.mxu0 0.0
    %892 = vmatprep.subr.mxu0 0.0
    %893 = vmatpush1.msra.mxu0 0.0
    %894 = vmatprep.subr.mxu0 0.0
    %895 = vmatpush1.msra.mxu0 0.0
    %896 = vmatprep.subr.mxu0 0.0
    %897 = vmatpush1.msra.mxu0 0.0
    %898 = vmatprep.subr.mxu0 0.0
    %899 = vmatpush1.msra.mxu0 0.0
    %900 = vmatprep.subr.mxu0 0.0
    %901 = vmatpush1.msra.mxu0 0.0
    %902 = vmatprep.subr.mxu0 0.0
    %903 = vmatpush1.msra.mxu0 0.0
    %904 = vmatprep.subr.mxu0 0.0
    %905 = vmatpush1.msra.mxu0 0.0
    %906 = vmatprep.subr.mxu0 0.0
    %907 = vmatpush1.msra.mxu0 0.0
    %908 = vmatprep.subr.mxu0 0.0
    %909 = vmatpush1.msra.mxu0 0.0
    %910 = vmatprep.subr.mxu0 0.0
    %911 = vmatpush1.msra.mxu0 0.0
    %912 = vmatprep.subr.mxu0 0.0
    %913 = vmatpush1.msra.mxu0 0.0
    %914 = vmatprep.subr.mxu0 0.0
    %915 = vmatpush1.msra.mxu0 0.0
    %916 = vmatprep.mubr.f32.mxu0 0.0
    %917 = vmatmul.mubr.f32.gmra.mrb[0].mxu0 %v850
    %v918 = vpop.f32.mrb[0].mxu0
    %v919 = vadd.f32 0.0, %v918
    %v920 = vpop.f32.mrb[0].mxu0
    %921 = vdwg.mxu0
    %v923 = vrot.slane %v919, 4
    %v925 = vadd.f32 %v191, %v923
    %v926 = vxor.u32 %v925, 2147483648
    %v927 = vmul.f32 %v926, 1.442695
    %v928 = vpow.pop %v927
    %v929 = vadd.f32 %v928, 1.0
    %v930 = vrcp.pop %v929
    %v931 = vmul.f32 1.0, %v930
    %v932 = vtanh.pop %v925
    %v934 = vrot.slane %v835, 6
    %v936 = vmul.f32 %v931, %v934
    %938 = vrot.lane.b32.xlu0 %v932, 64
    %v939 = vpop.permute.xlu0 %938
    %v941 = vmul.f32 %v931, %v939
    %943 = vrot.lane.b32.xlu0 %v941, 32
    %v944 = vpop.permute.xlu0 %943
    %v946 = vadd.f32 %v936, %v944
    %v947 = vtanh.pop %v946
    %949 = vrot.lane.b32.xlu0 %v947, 64
    %v950 = vpop.permute.xlu0 %949
    %v952 = vmul.f32 %v931, %v950
    %954 = vrot.lane.b32.xlu0 %v952, 32
    %v955 = vpop.permute.xlu0 %954
    %957 = vst.msk [vmem:[#allocation2 + $0x8] sm:$0x30] %vm517, %v955
    %v958 = vrot.slane %v952, 4
    %959 = vrot.lane.b32.xlu0 %v958, 32
    %v960 = vpop.permute.xlu0 %959
    %v961 = vsel %vm112, %v960, 0
    %963 = vmatprep.subr.mxu0 0.0
    %964 = vmatpush1.msra.mxu0 %v101
    %965 = vmatprep.subr.mxu0 0.0
    %966 = vmatpush1.msra.mxu0 %v102
    %967 = vmatprep.subr.mxu0 0.0
    %968 = vmatpush1.msra.mxu0 %v103
    %969 = vmatprep.subr.mxu0 0.0
    %970 = vmatpush1.msra.mxu0 %v104
    %971 = vmatprep.subr.mxu0 0.0
    %972 = vmatpush1.msra.mxu0 0.0
    %973 = vmatprep.subr.mxu0 0.0
    %974 = vmatpush1.msra.mxu0 0.0
    %975 = vmatprep.subr.mxu0 0.0
    %976 = vmatpush1.msra.mxu0 0.0
    %977 = vmatprep.subr.mxu0 0.0
    %978 = vmatpush1.msra.mxu0 0.0
    %979 = vmatprep.subr.mxu0 0.0
    %980 = vmatpush1.msra.mxu0 0.0
    %981 = vmatprep.subr.mxu0 0.0
    %982 = vmatpush1.msra.mxu0 0.0
    %983 = vmatprep.subr.mxu0 0.0
    %984 = vmatpush1.msra.mxu0 0.0
    %985 = vmatprep.subr.mxu0 0.0
    %986 = vmatpush1.msra.mxu0 0.0
    %987 = vmatprep.subr.mxu0 0.0
    %988 = vmatpush1.msra.mxu0 0.0
    %989 = vmatprep.subr.mxu0 0.0
    %990 = vmatpush1.msra.mxu0 0.0
    %991 = vmatprep.subr.mxu0 0.0
    %992 = vmatpush1.msra.mxu0 0.0
    %993 = vmatprep.subr.mxu0 0.0
    %994 = vmatpush1.msra.mxu0 0.0
    %995 = vmatprep.subr.mxu0 0.0
    %996 = vmatpush1.msra.mxu0 0.0
    %997 = vmatprep.subr.mxu0 0.0
    %998 = vmatpush1.msra.mxu0 0.0
    %999 = vmatprep.subr.mxu0 0.0
    %1000 = vmatpush1.msra.mxu0 0.0
    %1001 = vmatprep.subr.mxu0 0.0
    %1002 = vmatpush1.msra.mxu0 0.0
    %1003 = vmatprep.subr.mxu0 0.0
    %1004 = vmatpush1.msra.mxu0 0.0
    %1005 = vmatprep.subr.mxu0 0.0
    %1006 = vmatpush1.msra.mxu0 0.0
    %1007 = vmatprep.subr.mxu0 0.0
    %1008 = vmatpush1.msra.mxu0 0.0
    %1009 = vmatprep.subr.mxu0 0.0
    %1010 = vmatpush1.msra.mxu0 0.0
    %1011 = vmatprep.subr.mxu0 0.0
    %1012 = vmatpush1.msra.mxu0 0.0
    %1013 = vmatprep.subr.mxu0 0.0
    %1014 = vmatpush1.msra.mxu0 0.0
    %1015 = vmatprep.subr.mxu0 0.0
    %1016 = vmatpush1.msra.mxu0 0.0
    %1017 = vmatprep.subr.mxu0 0.0
    %1018 = vmatpush1.msra.mxu0 0.0
    %1019 = vmatprep.subr.mxu0 0.0
    %1020 = vmatpush1.msra.mxu0 0.0
    %1021 = vmatprep.subr.mxu0 0.0
    %1022 = vmatpush1.msra.mxu0 0.0
    %1023 = vmatprep.subr.mxu0 0.0
    %1024 = vmatpush1.msra.mxu0 0.0
    %1025 = vmatprep.subr.mxu0 0.0
    %1026 = vmatpush1.msra.mxu0 0.0
    %1027 = vmatprep.mubr.f32.mxu0 0.0
    %1028 = vmatmul.mubr.f32.gmra.mrb[0].mxu0 %v961
    %v1029 = vpop.f32.mrb[0].mxu0
    %v1030 = vadd.f32 0.0, %v1029
    %v1031 = vpop.f32.mrb[0].mxu0
    %1032 = vdwg.mxu0
    %v1034 = vrot.slane %v1030, 2
    %v1036 = vadd.f32 %v191, %v1034
    %v1037 = vxor.u32 %v1036, 2147483648
    %v1038 = vmul.f32 %v1037, 1.442695
    %v1039 = vpow.pop %v1038
    %v1040 = vadd.f32 %v1039, 1.0
    %v1041 = vrcp.pop %v1040
    %v1042 = vmul.f32 1.0, %v1041
    %v1043 = vtanh.pop %v1036
    %v1045 = vrot.slane %v946, 6
    %v1047 = vmul.f32 %v1042, %v1045
    %1049 = vrot.lane.b32.xlu0 %v1043, 64
    %v1050 = vpop.permute.xlu0 %1049
    %v1052 = vmul.f32 %v1042, %v1050
    %1054 = vrot.lane.b32.xlu0 %v1052, 32
    %v1055 = vpop.permute.xlu0 %1054
    %v1057 = vadd.f32 %v1047, %v1055
    %v1058 = vtanh.pop %v1057
    %1060 = vrot.lane.b32.xlu0 %v1058, 64
    %v1061 = vpop.permute.xlu0 %1060
    %v1063 = vmul.f32 %v1042, %v1061
    %1065 = vrot.lane.b32.xlu0 %v1063, 32
    %v1066 = vpop.permute.xlu0 %1065
    %1068 = vst.msk [vmem:[#allocation2 + $0x8] sm:$0xc0] %vm629, %v1066
    %v1069 = vld [vmem:[#allocation2] sm:$0xff]
    %v1070 = vld [vmem:[#allocation2 + $0x8] sm:$0xff]
    %v1071 = vld [vmem:[#allocation9] sm:$0xff]
    %v1072 = vld [vmem:[#allocation9 + $0x8] sm:$0xff]
    %v1073 = vld [vmem:[#allocation9 + $0x10] sm:$0xff]
    %v1074 = vld [vmem:[#allocation9 + $0x18] sm:$0xff]
    %v1075 = vld [vmem:[#allocation11] sm:$0xff]
    %v1076 = vld [vmem:[#allocation11 + $0x8] sm:$0xff]
    %v1077 = vld [vmem:[#allocation11 + $0x10] sm:$0xff]
    %v1078 = vld [vmem:[#allocation11 + $0x18] sm:$0xff]
    %v1079 = vld [vmem:[%s6] sm:$0x1]
    %v1081 = vlaneseq
    %v1082 = vshrl.u32 %v1081, 7
    %v1083 = vsub.s32 0, %v1082
    %v1084 = vrot.slane %v1079, %v1083
    %v1087 = vsel %vm112, %v1069, 0
    %v1090 = vsel %vm112, %v1070, 0
    %1092 = vmatprep.subr.mxu0 0.0
    %1093 = vmatpush1.msra.mxu0 %v1071
    %1094 = vmatprep.subr.mxu0 0.0
    %1095 = vmatpush1.msra.mxu0 %v1072
    %1096 = vmatprep.subr.mxu0 0.0
    %1097 = vmatpush1.msra.mxu0 %v1073
    %1098 = vmatprep.subr.mxu0 0.0
    %1099 = vmatpush1.msra.mxu0 %v1074
    %1100 = vmatprep.subr.mxu0 0.0
    %1101 = vmatpush1.msra.mxu0 0.0
    %1102 = vmatprep.subr.mxu0 0.0
    %1103 = vmatpush1.msra.mxu0 0.0
    %1104 = vmatprep.subr.mxu0 0.0
    %1105 = vmatpush1.msra.mxu0 0.0
    %1106 = vmatprep.subr.mxu0 0.0
    %1107 = vmatpush1.msra.mxu0 0.0
    %1108 = vmatprep.subr.mxu0 0.0
    %1109 = vmatpush1.msra.mxu0 0.0
    %1110 = vmatprep.subr.mxu0 0.0
    %1111 = vmatpush1.msra.mxu0 0.0
    %1112 = vmatprep.subr.mxu0 0.0
    %1113 = vmatpush1.msra.mxu0 0.0
    %1114 = vmatprep.subr.mxu0 0.0
    %1115 = vmatpush1.msra.mxu0 0.0
    %1116 = vmatprep.subr.mxu0 0.0
    %1117 = vmatpush1.msra.mxu0 0.0
    %1118 = vmatprep.subr.mxu0 0.0
    %1119 = vmatpush1.msra.mxu0 0.0
    %1120 = vmatprep.subr.mxu0 0.0
    %1121 = vmatpush1.msra.mxu0 0.0
    %1122 = vmatprep.subr.mxu0 0.0
    %1123 = vmatpush1.msra.mxu0 0.0
    %1124 = vmatprep.subr.mxu0 0.0
    %1125 = vmatpush1.msra.mxu0 0.0
    %1126 = vmatprep.subr.mxu0 0.0
    %1127 = vmatpush1.msra.mxu0 0.0
    %1128 = vmatprep.subr.mxu0 0.0
    %1129 = vmatpush1.msra.mxu0 0.0
    %1130 = vmatprep.subr.mxu0 0.0
    %1131 = vmatpush1.msra.mxu0 0.0
    %1132 = vmatprep.subr.mxu0 0.0
    %1133 = vmatpush1.msra.mxu0 0.0
    %1134 = vmatprep.subr.mxu0 0.0
    %1135 = vmatpush1.msra.mxu0 0.0
    %1136 = vmatprep.subr.mxu0 0.0
    %1137 = vmatpush1.msra.mxu0 0.0
    %1138 = vmatprep.subr.mxu0 0.0
    %1139 = vmatpush1.msra.mxu0 0.0
    %1140 = vmatprep.subr.mxu0 0.0
    %1141 = vmatpush1.msra.mxu0 0.0
    %1142 = vmatprep.subr.mxu0 0.0
    %1143 = vmatpush1.msra.mxu0 0.0
    %1144 = vmatprep.subr.mxu0 0.0
    %1145 = vmatpush1.msra.mxu0 0.0
    %1146 = vmatprep.subr.mxu0 0.0
    %1147 = vmatpush1.msra.mxu0 0.0
    %1148 = vmatprep.subr.mxu0 0.0
    %1149 = vmatpush1.msra.mxu0 0.0
    %1150 = vmatprep.subr.mxu0 0.0
    %1151 = vmatpush1.msra.mxu0 0.0
    %1152 = vmatprep.subr.mxu0 0.0
    %1153 = vmatpush1.msra.mxu0 0.0
    %1154 = vmatprep.subr.mxu0 0.0
    %1155 = vmatpush1.msra.mxu0 0.0
    %1156 = vmatprep.mubr.f32.mxu0 0.0
    %1157 = vmatmul.mubr.f32.gmra.mrb[0].mxu0 %v1087
    %v1158 = vpop.f32.mrb[0].mxu0
    %v1159 = vadd.f32 %v1084, %v1158
    %v1160 = vpop.f32.mrb[0].mxu0
    %1161 = vmatprep.mubr.f32.mxu0 0.0
    %1162 = vmatmul.mubr.f32.gmra.mrb[0].mxu0 %v1090
    %v1163 = vpop.f32.mrb[0].mxu0
    %v1164 = vadd.f32 %v1084, %v1163
    %v1165 = vpop.f32.mrb[0].mxu0
    %1166 = vdwg.mxu0
    %1167 = vmatprep.subr.mxu0 0.0
    %1168 = vmatpush1.msra.mxu0 %v1075
    %1169 = vmatprep.subr.mxu0 0.0
    %1170 = vmatpush1.msra.mxu0 %v1076
    %1171 = vmatprep.subr.mxu0 0.0
    %1172 = vmatpush1.msra.mxu0 %v1077
    %1173 = vmatprep.subr.mxu0 0.0
    %1174 = vmatpush1.msra.mxu0 %v1078
    %1175 = vmatprep.subr.mxu0 0.0
    %1176 = vmatpush1.msra.mxu0 0.0
    %1177 = vmatprep.subr.mxu0 0.0
    %1178 = vmatpush1.msra.mxu0 0.0
    %1179 = vmatprep.subr.mxu0 0.0
    %1180 = vmatpush1.msra.mxu0 0.0
    %1181 = vmatprep.subr.mxu0 0.0
    %1182 = vmatpush1.msra.mxu0 0.0
    %1183 = vmatprep.subr.mxu0 0.0
    %1184 = vmatpush1.msra.mxu0 0.0
    %1185 = vmatprep.subr.mxu0 0.0
    %1186 = vmatpush1.msra.mxu0 0.0
    %1187 = vmatprep.subr.mxu0 0.0
    %1188 = vmatpush1.msra.mxu0 0.0
    %1189 = vmatprep.subr.mxu0 0.0
    %1190 = vmatpush1.msra.mxu0 0.0
    %1191 = vmatprep.subr.mxu0 0.0
    %1192 = vmatpush1.msra.mxu0 0.0
    %1193 = vmatprep.subr.mxu0 0.0
    %1194 = vmatpush1.msra.mxu0 0.0
    %1195 = vmatprep.subr.mxu0 0.0
    %1196 = vmatpush1.msra.mxu0 0.0
    %1197 = vmatprep.subr.mxu0 0.0
    %1198 = vmatpush1.msra.mxu0 0.0
    %1199 = vmatprep.subr.mxu0 0.0
    %1200 = vmatpush1.msra.mxu0 0.0
    %1201 = vmatprep.subr.mxu0 0.0
    %1202 = vmatpush1.msra.mxu0 0.0
    %1203 = vmatprep.subr.mxu0 0.0
    %1204 = vmatpush1.msra.mxu0 0.0
    %1205 = vmatprep.subr.mxu0 0.0
    %1206 = vmatpush1.msra.mxu0 0.0
    %1207 = vmatprep.subr.mxu0 0.0
    %1208 = vmatpush1.msra.mxu0 0.0
    %1209 = vmatprep.subr.mxu0 0.0
    %1210 = vmatpush1.msra.mxu0 0.0
    %1211 = vmatprep.subr.mxu0 0.0
    %1212 = vmatpush1.msra.mxu0 0.0
    %1213 = vmatprep.subr.mxu0 0.0
    %1214 = vmatpush1.msra.mxu0 0.0
    %1215 = vmatprep.subr.mxu0 0.0
    %1216 = vmatpush1.msra.mxu0 0.0
    %1217 = vmatprep.subr.mxu0 0.0
    %1218 = vmatpush1.msra.mxu0 0.0
    %1219 = vmatprep.subr.mxu0 0.0
    %1220 = vmatpush1.msra.mxu0 0.0
    %1221 = vmatprep.subr.mxu0 0.0
    %1222 = vmatpush1.msra.mxu0 0.0
    %1223 = vmatprep.subr.mxu0 0.0
    %1224 = vmatpush1.msra.mxu0 0.0
    %1225 = vmatprep.subr.mxu0 0.0
    %1226 = vmatpush1.msra.mxu0 0.0
    %1227 = vmatprep.subr.mxu0 0.0
    %1228 = vmatpush1.msra.mxu0 0.0
    %1229 = vmatprep.subr.mxu0 0.0
    %1230 = vmatpush1.msra.mxu0 0.0
    %1231 = vmatprep.mubr.f32.mxu0 0.0
    %1232 = vmatmul.mubr.f32.gmra.mrb[0].mxu0 %v195
    %v1233 = vpop.f32.mrb[0].mxu0
    %v1234 = vadd.f32 0.0, %v1233
    %v1235 = vpop.f32.mrb[0].mxu0
    %1236 = vdwg.mxu0
    %v1237 = vadd.f32 %v1159, %v1234
    %v1238 = vxor.u32 %v1237, 2147483648
    %v1239 = vmul.f32 %v1238, 1.442695
    %v1240 = vpow.pop %v1239
    %v1241 = vadd.f32 %v1240, 1.0
    %v1242 = vrcp.pop %v1241
    %v1243 = vmul.f32 1.0, %v1242
    %v1244 = vtanh.pop %v1237
    %v1245 = vmul.f32 %v1243, 0.0
    %1247 = vrot.lane.b32.xlu0 %v1244, 64
    %v1248 = vpop.permute.xlu0 %1247
    %v1250 = vmul.f32 %v1243, %v1248
    %1252 = vrot.lane.b32.xlu0 %v1250, 32
    %v1253 = vpop.permute.xlu0 %1252
    %v1255 = vadd.f32 %v1245, %v1253
    %v1256 = vtanh.pop %v1255
    %1258 = vrot.lane.b32.xlu0 %v1256, 64
    %v1259 = vpop.permute.xlu0 %1258
    %v1261 = vmul.f32 %v1243, %v1259
    %1263 = vrot.lane.b32.xlu0 %v1261, 32
    %v1264 = vpop.permute.xlu0 %1263
    %1266 = vst.msk [vmem:[#allocation12] sm:$0x3] %vm296, %v1264
    %v1267 = vsel %vm112, %v1264, 0
    %1269 = vmatprep.subr.mxu0 0.0
    %1270 = vmatpush1.msra.mxu0 %v1075
    %1271 = vmatprep.subr.mxu0 0.0
    %1272 = vmatpush1.msra.mxu0 %v1076
    %1273 = vmatprep.subr.mxu0 0.0
    %1274 = vmatpush1.msra.mxu0 %v1077
    %1275 = vmatprep.subr.mxu0 0.0
    %1276 = vmatpush1.msra.mxu0 %v1078
    %1277 = vmatprep.subr.mxu0 0.0
    %1278 = vmatpush1.msra.mxu0 0.0
    %1279 = vmatprep.subr.mxu0 0.0
    %1280 = vmatpush1.msra.mxu0 0.0
    %1281 = vmatprep.subr.mxu0 0.0
    %1282 = vmatpush1.msra.mxu0 0.0
    %1283 = vmatprep.subr.mxu0 0.0
    %1284 = vmatpush1.msra.mxu0 0.0
    %1285 = vmatprep.subr.mxu0 0.0
    %1286 = vmatpush1.msra.mxu0 0.0
    %1287 = vmatprep.subr.mxu0 0.0
    %1288 = vmatpush1.msra.mxu0 0.0
    %1289 = vmatprep.subr.mxu0 0.0
    %1290 = vmatpush1.msra.mxu0 0.0
    %1291 = vmatprep.subr.mxu0 0.0
    %1292 = vmatpush1.msra.mxu0 0.0
    %1293 = vmatprep.subr.mxu0 0.0
    %1294 = vmatpush1.msra.mxu0 0.0
    %1295 = vmatprep.subr.mxu0 0.0
    %1296 = vmatpush1.msra.mxu0 0.0
    %1297 = vmatprep.subr.mxu0 0.0
    %1298 = vmatpush1.msra.mxu0 0.0
    %1299 = vmatprep.subr.mxu0 0.0
    %1300 = vmatpush1.msra.mxu0 0.0
    %1301 = vmatprep.subr.mxu0 0.0
    %1302 = vmatpush1.msra.mxu0 0.0
    %1303 = vmatprep.subr.mxu0 0.0
    %1304 = vmatpush1.msra.mxu0 0.0
    %1305 = vmatprep.subr.mxu0 0.0
    %1306 = vmatpush1.msra.mxu0 0.0
    %1307 = vmatprep.subr.mxu0 0.0
    %1308 = vmatpush1.msra.mxu0 0.0
    %1309 = vmatprep.subr.mxu0 0.0
    %1310 = vmatpush1.msra.mxu0 0.0
    %1311 = vmatprep.subr.mxu0 0.0
    %1312 = vmatpush1.msra.mxu0 0.0
    %1313 = vmatprep.subr.mxu0 0.0
    %1314 = vmatpush1.msra.mxu0 0.0
    %1315 = vmatprep.subr.mxu0 0.0
    %1316 = vmatpush1.msra.mxu0 0.0
    %1317 = vmatprep.subr.mxu0 0.0
    %1318 = vmatpush1.msra.mxu0 0.0
    %1319 = vmatprep.subr.mxu0 0.0
    %1320 = vmatpush1.msra.mxu0 0.0
    %1321 = vmatprep.subr.mxu0 0.0
    %1322 = vmatpush1.msra.mxu0 0.0
    %1323 = vmatprep.subr.mxu0 0.0
    %1324 = vmatpush1.msra.mxu0 0.0
    %1325 = vmatprep.subr.mxu0 0.0
    %1326 = vmatpush1.msra.mxu0 0.0
    %1327 = vmatprep.subr.mxu0 0.0
    %1328 = vmatpush1.msra.mxu0 0.0
    %1329 = vmatprep.subr.mxu0 0.0
    %1330 = vmatpush1.msra.mxu0 0.0
    %1331 = vmatprep.subr.mxu0 0.0
    %1332 = vmatpush1.msra.mxu0 0.0
    %1333 = vmatprep.mubr.f32.mxu0 0.0
    %1334 = vmatmul.mubr.f32.gmra.mrb[0].mxu0 %v1267
    %v1335 = vpop.f32.mrb[0].mxu0
    %v1336 = vadd.f32 0.0, %v1335
    %v1337 = vpop.f32.mrb[0].mxu0
    %1338 = vdwg.mxu0
    %v1340 = vrot.slane %v1336, 6
    %v1342 = vadd.f32 %v1159, %v1340
    %v1343 = vxor.u32 %v1342, 2147483648
    %v1344 = vmul.f32 %v1343, 1.442695
    %v1345 = vpow.pop %v1344
    %v1346 = vadd.f32 %v1345, 1.0
    %v1347 = vrcp.pop %v1346
    %v1348 = vmul.f32 1.0, %v1347
    %v1349 = vtanh.pop %v1342
    %v1351 = vrot.slane %v1255, 6
    %v1353 = vmul.f32 %v1348, %v1351
    %1355 = vrot.lane.b32.xlu0 %v1349, 64
    %v1356 = vpop.permute.xlu0 %1355
    %v1358 = vmul.f32 %v1348, %v1356
    %1360 = vrot.lane.b32.xlu0 %v1358, 32
    %v1361 = vpop.permute.xlu0 %1360
    %v1363 = vadd.f32 %v1353, %v1361
    %v1364 = vtanh.pop %v1363
    %1366 = vrot.lane.b32.xlu0 %v1364, 64
    %v1367 = vpop.permute.xlu0 %1366
    %v1369 = vmul.f32 %v1348, %v1367
    %1371 = vrot.lane.b32.xlu0 %v1369, 32
    %v1372 = vpop.permute.xlu0 %1371
    %1374 = vst.msk [vmem:[#allocation12] sm:$0xc] %vm405, %v1372
    %v1375 = vrot.slane %v1369, 2
    %1376 = vrot.lane.b32.xlu0 %v1375, 32
    %v1377 = vpop.permute.xlu0 %1376
    %v1378 = vsel %vm112, %v1377, 0
    %1380 = vmatprep.subr.mxu0 0.0
    %1381 = vmatpush1.msra.mxu0 %v1075
    %1382 = vmatprep.subr.mxu0 0.0
    %1383 = vmatpush1.msra.mxu0 %v1076
    %1384 = vmatprep.subr.mxu0 0.0
    %1385 = vmatpush1.msra.mxu0 %v1077
    %1386 = vmatprep.subr.mxu0 0.0
    %1387 = vmatpush1.msra.mxu0 %v1078
    %1388 = vmatprep.subr.mxu0 0.0
    %1389 = vmatpush1.msra.mxu0 0.0
    %1390 = vmatprep.subr.mxu0 0.0
    %1391 = vmatpush1.msra.mxu0 0.0
    %1392 = vmatprep.subr.mxu0 0.0
    %1393 = vmatpush1.msra.mxu0 0.0
    %1394 = vmatprep.subr.mxu0 0.0
    %1395 = vmatpush1.msra.mxu0 0.0
    %1396 = vmatprep.subr.mxu0 0.0
    %1397 = vmatpush1.msra.mxu0 0.0
    %1398 = vmatprep.subr.mxu0 0.0
    %1399 = vmatpush1.msra.mxu0 0.0
    %1400 = vmatprep.subr.mxu0 0.0
    %1401 = vmatpush1.msra.mxu0 0.0
    %1402 = vmatprep.subr.mxu0 0.0
    %1403 = vmatpush1.msra.mxu0 0.0
    %1404 = vmatprep.subr.mxu0 0.0
    %1405 = vmatpush1.msra.mxu0 0.0
    %1406 = vmatprep.subr.mxu0 0.0
    %1407 = vmatpush1.msra.mxu0 0.0
    %1408 = vmatprep.subr.mxu0 0.0
    %1409 = vmatpush1.msra.mxu0 0.0
    %1410 = vmatprep.subr.mxu0 0.0
    %1411 = vmatpush1.msra.mxu0 0.0
    %1412 = vmatprep.subr.mxu0 0.0
    %1413 = vmatpush1.msra.mxu0 0.0
    %1414 = vmatprep.subr.mxu0 0.0
    %1415 = vmatpush1.msra.mxu0 0.0
    %1416 = vmatprep.subr.mxu0 0.0
    %1417 = vmatpush1.msra.mxu0 0.0
    %1418 = vmatprep.subr.mxu0 0.0
    %1419 = vmatpush1.msra.mxu0 0.0
    %1420 = vmatprep.subr.mxu0 0.0
    %1421 = vmatpush1.msra.mxu0 0.0
    %1422 = vmatprep.subr.mxu0 0.0
    %1423 = vmatpush1.msra.mxu0 0.0
    %1424 = vmatprep.subr.mxu0 0.0
    %1425 = vmatpush1.msra.mxu0 0.0
    %1426 = vmatprep.subr.mxu0 0.0
    %1427 = vmatpush1.msra.mxu0 0.0
    %1428 = vmatprep.subr.mxu0 0.0
    %1429 = vmatpush1.msra.mxu0 0.0
    %1430 = vmatprep.subr.mxu0 0.0
    %1431 = vmatpush1.msra.mxu0 0.0
    %1432 = vmatprep.subr.mxu0 0.0
    %1433 = vmatpush1.msra.mxu0 0.0
    %1434 = vmatprep.subr.mxu0 0.0
    %1435 = vmatpush1.msra.mxu0 0.0
    %1436 = vmatprep.subr.mxu0 0.0
    %1437 = vmatpush1.msra.mxu0 0.0
    %1438 = vmatprep.subr.mxu0 0.0
    %1439 = vmatpush1.msra.mxu0 0.0
    %1440 = vmatprep.subr.mxu0 0.0
    %1441 = vmatpush1.msra.mxu0 0.0
    %1442 = vmatprep.subr.mxu0 0.0
    %1443 = vmatpush1.msra.mxu0 0.0
    %1444 = vmatprep.mubr.f32.mxu0 0.0
    %1445 = vmatmul.mubr.f32.gmra.mrb[0].mxu0 %v1378
    %v1446 = vpop.f32.mrb[0].mxu0
    %v1447 = vadd.f32 0.0, %v1446
    %v1448 = vpop.f32.mrb[0].mxu0
    %1449 = vdwg.mxu0
    %v1451 = vrot.slane %v1447, 4
    %v1453 = vadd.f32 %v1159, %v1451
    %v1454 = vxor.u32 %v1453, 2147483648
    %v1455 = vmul.f32 %v1454, 1.442695
    %v1456 = vpow.pop %v1455
    %v1457 = vadd.f32 %v1456, 1.0
    %v1458 = vrcp.pop %v1457
    %v1459 = vmul.f32 1.0, %v1458
    %v1460 = vtanh.pop %v1453
    %v1462 = vrot.slane %v1363, 6
    %v1464 = vmul.f32 %v1459, %v1462
    %1466 = vrot.lane.b32.xlu0 %v1460, 64
    %v1467 = vpop.permute.xlu0 %1466
    %v1469 = vmul.f32 %v1459, %v1467
    %1471 = vrot.lane.b32.xlu0 %v1469, 32
    %v1472 = vpop.permute.xlu0 %1471
    %v1474 = vadd.f32 %v1464, %v1472
    %v1475 = vtanh.pop %v1474
    %1477 = vrot.lane.b32.xlu0 %v1475, 64
    %v1478 = vpop.permute.xlu0 %1477
    %v1480 = vmul.f32 %v1459, %v1478
    %1482 = vrot.lane.b32.xlu0 %v1480, 32
    %v1483 = vpop.permute.xlu0 %1482
    %1485 = vst.msk [vmem:[#allocation12] sm:$0x30] %vm517, %v1483
    %v1486 = vrot.slane %v1480, 4
    %1487 = vrot.lane.b32.xlu0 %v1486, 32
    %v1488 = vpop.permute.xlu0 %1487
    %v1489 = vsel %vm112, %v1488, 0
    %1491 = vmatprep.subr.mxu0 0.0
    %1492 = vmatpush1.msra.mxu0 %v1075
    %1493 = vmatprep.subr.mxu0 0.0
    %1494 = vmatpush1.msra.mxu0 %v1076
    %1495 = vmatprep.subr.mxu0 0.0
    %1496 = vmatpush1.msra.mxu0 %v1077
    %1497 = vmatprep.subr.mxu0 0.0
    %1498 = vmatpush1.msra.mxu0 %v1078
    %1499 = vmatprep.subr.mxu0 0.0
    %1500 = vmatpush1.msra.mxu0 0.0
    %1501 = vmatprep.subr.mxu0 0.0
    %1502 = vmatpush1.msra.mxu0 0.0
    %1503 = vmatprep.subr.mxu0 0.0
    %1504 = vmatpush1.msra.mxu0 0.0
    %1505 = vmatprep.subr.mxu0 0.0
    %1506 = vmatpush1.msra.mxu0 0.0
    %1507 = vmatprep.subr.mxu0 0.0
    %1508 = vmatpush1.msra.mxu0 0.0
    %1509 = vmatprep.subr.mxu0 0.0
    %1510 = vmatpush1.msra.mxu0 0.0
    %1511 = vmatprep.subr.mxu0 0.0
    %1512 = vmatpush1.msra.mxu0 0.0
    %1513 = vmatprep.subr.mxu0 0.0
    %1514 = vmatpush1.msra.mxu0 0.0
    %1515 = vmatprep.subr.mxu0 0.0
    %1516 = vmatpush1.msra.mxu0 0.0
    %1517 = vmatprep.subr.mxu0 0.0
    %1518 = vmatpush1.msra.mxu0 0.0
    %1519 = vmatprep.subr.mxu0 0.0
    %1520 = vmatpush1.msra.mxu0 0.0
    %1521 = vmatprep.subr.mxu0 0.0
    %1522 = vmatpush1.msra.mxu0 0.0
    %1523 = vmatprep.subr.mxu0 0.0
    %1524 = vmatpush1.msra.mxu0 0.0
    %1525 = vmatprep.subr.mxu0 0.0
    %1526 = vmatpush1.msra.mxu0 0.0
    %1527 = vmatprep.subr.mxu0 0.0
    %1528 = vmatpush1.msra.mxu0 0.0
    %1529 = vmatprep.subr.mxu0 0.0
    %1530 = vmatpush1.msra.mxu0 0.0
    %1531 = vmatprep.subr.mxu0 0.0
    %1532 = vmatpush1.msra.mxu0 0.0
    %1533 = vmatprep.subr.mxu0 0.0
    %1534 = vmatpush1.msra.mxu0 0.0
    %1535 = vmatprep.subr.mxu0 0.0
    %1536 = vmatpush1.msra.mxu0 0.0
    %1537 = vmatprep.subr.mxu0 0.0
    %1538 = vmatpush1.msra.mxu0 0.0
    %1539 = vmatprep.subr.mxu0 0.0
    %1540 = vmatpush1.msra.mxu0 0.0
    %1541 = vmatprep.subr.mxu0 0.0
    %1542 = vmatpush1.msra.mxu0 0.0
    %1543 = vmatprep.subr.mxu0 0.0
    %1544 = vmatpush1.msra.mxu0 0.0
    %1545 = vmatprep.subr.mxu0 0.0
    %1546 = vmatpush1.msra.mxu0 0.0
    %1547 = vmatprep.subr.mxu0 0.0
    %1548 = vmatpush1.msra.mxu0 0.0
    %1549 = vmatprep.subr.mxu0 0.0
    %1550 = vmatpush1.msra.mxu0 0.0
    %1551 = vmatprep.subr.mxu0 0.0
    %1552 = vmatpush1.msra.mxu0 0.0
    %1553 = vmatprep.subr.mxu0 0.0
    %1554 = vmatpush1.msra.mxu0 0.0
    %1555 = vmatprep.mubr.f32.mxu0 0.0
    %1556 = vmatmul.mubr.f32.gmra.mrb[0].mxu0 %v1489
    %v1557 = vpop.f32.mrb[0].mxu0
    %v1558 = vadd.f32 0.0, %v1557
    %v1559 = vpop.f32.mrb[0].mxu0
    %1560 = vdwg.mxu0
    %v1562 = vrot.slane %v1558, 2
    %v1564 = vadd.f32 %v1159, %v1562
    %v1565 = vxor.u32 %v1564, 2147483648
    %v1566 = vmul.f32 %v1565, 1.442695
    %v1567 = vpow.pop %v1566
    %v1568 = vadd.f32 %v1567, 1.0
    %v1569 = vrcp.pop %v1568
    %v1570 = vmul.f32 1.0, %v1569
    %v1571 = vtanh.pop %v1564
    %v1573 = vrot.slane %v1474, 6
    %v1575 = vmul.f32 %v1570, %v1573
    %1577 = vrot.lane.b32.xlu0 %v1571, 64
    %v1578 = vpop.permute.xlu0 %1577
    %v1580 = vmul.f32 %v1570, %v1578
    %1582 = vrot.lane.b32.xlu0 %v1580, 32
    %v1583 = vpop.permute.xlu0 %1582
    %v1585 = vadd.f32 %v1575, %v1583
    %v1586 = vtanh.pop %v1585
    %1588 = vrot.lane.b32.xlu0 %v1586, 64
    %v1589 = vpop.permute.xlu0 %1588
    %v1591 = vmul.f32 %v1570, %v1589
    %1593 = vrot.lane.b32.xlu0 %v1591, 32
    %v1594 = vpop.permute.xlu0 %1593
    %1596 = vst.msk [vmem:[#allocation12] sm:$0xc0] %vm629, %v1594
    %v1597 = vrot.slane %v1591, 6
    %1598 = vrot.lane.b32.xlu0 %v1597, 32
    %v1599 = vpop.permute.xlu0 %1598
    %v1600 = vsel %vm112, %v1599, 0
    %1602 = vmatprep.subr.mxu0 0.0
    %1603 = vmatpush1.msra.mxu0 %v1075
    %1604 = vmatprep.subr.mxu0 0.0
    %1605 = vmatpush1.msra.mxu0 %v1076
    %1606 = vmatprep.subr.mxu0 0.0
    %1607 = vmatpush1.msra.mxu0 %v1077
    %1608 = vmatprep.subr.mxu0 0.0
    %1609 = vmatpush1.msra.mxu0 %v1078
    %1610 = vmatprep.subr.mxu0 0.0
    %1611 = vmatpush1.msra.mxu0 0.0
    %1612 = vmatprep.subr.mxu0 0.0
    %1613 = vmatpush1.msra.mxu0 0.0
    %1614 = vmatprep.subr.mxu0 0.0
    %1615 = vmatpush1.msra.mxu0 0.0
    %1616 = vmatprep.subr.mxu0 0.0
    %1617 = vmatpush1.msra.mxu0 0.0
    %1618 = vmatprep.subr.mxu0 0.0
    %1619 = vmatpush1.msra.mxu0 0.0
    %1620 = vmatprep.subr.mxu0 0.0
    %1621 = vmatpush1.msra.mxu0 0.0
    %1622 = vmatprep.subr.mxu0 0.0
    %1623 = vmatpush1.msra.mxu0 0.0
    %1624 = vmatprep.subr.mxu0 0.0
    %1625 = vmatpush1.msra.mxu0 0.0
    %1626 = vmatprep.subr.mxu0 0.0
    %1627 = vmatpush1.msra.mxu0 0.0
    %1628 = vmatprep.subr.mxu0 0.0
    %1629 = vmatpush1.msra.mxu0 0.0
    %1630 = vmatprep.subr.mxu0 0.0
    %1631 = vmatpush1.msra.mxu0 0.0
    %1632 = vmatprep.subr.mxu0 0.0
    %1633 = vmatpush1.msra.mxu0 0.0
    %1634 = vmatprep.subr.mxu0 0.0
    %1635 = vmatpush1.msra.mxu0 0.0
    %1636 = vmatprep.subr.mxu0 0.0
    %1637 = vmatpush1.msra.mxu0 0.0
    %1638 = vmatprep.subr.mxu0 0.0
    %1639 = vmatpush1.msra.mxu0 0.0
    %1640 = vmatprep.subr.mxu0 0.0
    %1641 = vmatpush1.msra.mxu0 0.0
    %1642 = vmatprep.subr.mxu0 0.0
    %1643 = vmatpush1.msra.mxu0 0.0
    %1644 = vmatprep.subr.mxu0 0.0
    %1645 = vmatpush1.msra.mxu0 0.0
    %1646 = vmatprep.subr.mxu0 0.0
    %1647 = vmatpush1.msra.mxu0 0.0
    %1648 = vmatprep.subr.mxu0 0.0
    %1649 = vmatpush1.msra.mxu0 0.0
    %1650 = vmatprep.subr.mxu0 0.0
    %1651 = vmatpush1.msra.mxu0 0.0
    %1652 = vmatprep.subr.mxu0 0.0
    %1653 = vmatpush1.msra.mxu0 0.0
    %1654 = vmatprep.subr.mxu0 0.0
    %1655 = vmatpush1.msra.mxu0 0.0
    %1656 = vmatprep.subr.mxu0 0.0
    %1657 = vmatpush1.msra.mxu0 0.0
    %1658 = vmatprep.subr.mxu0 0.0
    %1659 = vmatpush1.msra.mxu0 0.0
    %1660 = vmatprep.subr.mxu0 0.0
    %1661 = vmatpush1.msra.mxu0 0.0
    %1662 = vmatprep.subr.mxu0 0.0
    %1663 = vmatpush1.msra.mxu0 0.0
    %1664 = vmatprep.subr.mxu0 0.0
    %1665 = vmatpush1.msra.mxu0 0.0
    %1666 = vmatprep.mubr.f32.mxu0 0.0
    %1667 = vmatmul.mubr.f32.gmra.mrb[0].mxu0 %v1600
    %v1668 = vpop.f32.mrb[0].mxu0
    %v1669 = vadd.f32 0.0, %v1668
    %v1670 = vpop.f32.mrb[0].mxu0
    %1671 = vdwg.mxu0
    %v1672 = vadd.f32 %v1164, %v1669
    %v1673 = vxor.u32 %v1672, 2147483648
    %v1674 = vmul.f32 %v1673, 1.442695
    %v1675 = vpow.pop %v1674
    %v1676 = vadd.f32 %v1675, 1.0
    %v1677 = vrcp.pop %v1676
    %v1678 = vmul.f32 1.0, %v1677
    %v1679 = vtanh.pop %v1672
    %v1681 = vrot.slane %v1585, 6
    %v1683 = vmul.f32 %v1678, %v1681
    %1685 = vrot.lane.b32.xlu0 %v1679, 64
    %v1686 = vpop.permute.xlu0 %1685
    %v1688 = vmul.f32 %v1678, %v1686
    %1690 = vrot.lane.b32.xlu0 %v1688, 32
    %v1691 = vpop.permute.xlu0 %1690
    %v1693 = vadd.f32 %v1683, %v1691
    %v1694 = vtanh.pop %v1693
    %1696 = vrot.lane.b32.xlu0 %v1694, 64
    %v1697 = vpop.permute.xlu0 %1696
    %v1699 = vmul.f32 %v1678, %v1697
    %1701 = vrot.lane.b32.xlu0 %v1699, 32
    %v1702 = vpop.permute.xlu0 %1701
    %1704 = vst.msk [vmem:[#allocation12 + $0x8] sm:$0x3] %vm296, %v1702
    %v1705 = vsel %vm112, %v1702, 0
    %1707 = vmatprep.subr.mxu0 0.0
    %1708 = vmatpush1.msra.mxu0 %v1075
    %1709 = vmatprep.subr.mxu0 0.0
    %1710 = vmatpush1.msra.mxu0 %v1076
    %1711 = vmatprep.subr.mxu0 0.0
    %1712 = vmatpush1.msra.mxu0 %v1077
    %1713 = vmatprep.subr.mxu0 0.0
    %1714 = vmatpush1.msra.mxu0 %v1078
    %1715 = vmatprep.subr.mxu0 0.0
    %1716 = vmatpush1.msra.mxu0 0.0
    %1717 = vmatprep.subr.mxu0 0.0
    %1718 = vmatpush1.msra.mxu0 0.0
    %1719 = vmatprep.subr.mxu0 0.0
    %1720 = vmatpush1.msra.mxu0 0.0
    %1721 = vmatprep.subr.mxu0 0.0
    %1722 = vmatpush1.msra.mxu0 0.0
    %1723 = vmatprep.subr.mxu0 0.0
    %1724 = vmatpush1.msra.mxu0 0.0
    %1725 = vmatprep.subr.mxu0 0.0
    %1726 = vmatpush1.msra.mxu0 0.0
    %1727 = vmatprep.subr.mxu0 0.0
    %1728 = vmatpush1.msra.mxu0 0.0
    %1729 = vmatprep.subr.mxu0 0.0
    %1730 = vmatpush1.msra.mxu0 0.0
    %1731 = vmatprep.subr.mxu0 0.0
    %1732 = vmatpush1.msra.mxu0 0.0
    %1733 = vmatprep.subr.mxu0 0.0
    %1734 = vmatpush1.msra.mxu0 0.0
    %1735 = vmatprep.subr.mxu0 0.0
    %1736 = vmatpush1.msra.mxu0 0.0
    %1737 = vmatprep.subr.mxu0 0.0
    %1738 = vmatpush1.msra.mxu0 0.0
    %1739 = vmatprep.subr.mxu0 0.0
    %1740 = vmatpush1.msra.mxu0 0.0
    %1741 = vmatprep.subr.mxu0 0.0
    %1742 = vmatpush1.msra.mxu0 0.0
    %1743 = vmatprep.subr.mxu0 0.0
    %1744 = vmatpush1.msra.mxu0 0.0
    %1745 = vmatprep.subr.mxu0 0.0
    %1746 = vmatpush1.msra.mxu0 0.0
    %1747 = vmatprep.subr.mxu0 0.0
    %1748 = vmatpush1.msra.mxu0 0.0
    %1749 = vmatprep.subr.mxu0 0.0
    %1750 = vmatpush1.msra.mxu0 0.0
    %1751 = vmatprep.subr.mxu0 0.0
    %1752 = vmatpush1.msra.mxu0 0.0
    %1753 = vmatprep.subr.mxu0 0.0
    %1754 = vmatpush1.msra.mxu0 0.0
    %1755 = vmatprep.subr.mxu0 0.0
    %1756 = vmatpush1.msra.mxu0 0.0
    %1757 = vmatprep.subr.mxu0 0.0
    %1758 = vmatpush1.msra.mxu0 0.0
    %1759 = vmatprep.subr.mxu0 0.0
    %1760 = vmatpush1.msra.mxu0 0.0
    %1761 = vmatprep.subr.mxu0 0.0
    %1762 = vmatpush1.msra.mxu0 0.0
    %1763 = vmatprep.subr.mxu0 0.0
    %1764 = vmatpush1.msra.mxu0 0.0
    %1765 = vmatprep.subr.mxu0 0.0
    %1766 = vmatpush1.msra.mxu0 0.0
    %1767 = vmatprep.subr.mxu0 0.0
    %1768 = vmatpush1.msra.mxu0 0.0
    %1769 = vmatprep.subr.mxu0 0.0
    %1770 = vmatpush1.msra.mxu0 0.0
    %1771 = vmatprep.mubr.f32.mxu0 0.0
    %1772 = vmatmul.mubr.f32.gmra.mrb[0].mxu0 %v1705
    %v1773 = vpop.f32.mrb[0].mxu0
    %v1774 = vadd.f32 0.0, %v1773
    %v1775 = vpop.f32.mrb[0].mxu0
    %1776 = vdwg.mxu0
    %v1778 = vrot.slane %v1774, 6
    %v1780 = vadd.f32 %v1164, %v1778
    %v1781 = vxor.u32 %v1780, 2147483648
    %v1782 = vmul.f32 %v1781, 1.442695
    %v1783 = vpow.pop %v1782
    %v1784 = vadd.f32 %v1783, 1.0
    %v1785 = vrcp.pop %v1784
    %v1786 = vmul.f32 1.0, %v1785
    %v1787 = vtanh.pop %v1780
    %v1789 = vrot.slane %v1693, 6
    %v1791 = vmul.f32 %v1786, %v1789
    %1793 = vrot.lane.b32.xlu0 %v1787, 64
    %v1794 = vpop.permute.xlu0 %1793
    %v1796 = vmul.f32 %v1786, %v1794
    %1798 = vrot.lane.b32.xlu0 %v1796, 32
    %v1799 = vpop.permute.xlu0 %1798
    %v1801 = vadd.f32 %v1791, %v1799
    %v1802 = vtanh.pop %v1801
    %1804 = vrot.lane.b32.xlu0 %v1802, 64
    %v1805 = vpop.permute.xlu0 %1804
    %v1807 = vmul.f32 %v1786, %v1805
    %1809 = vrot.lane.b32.xlu0 %v1807, 32
    %v1810 = vpop.permute.xlu0 %1809
    %1812 = vst.msk [vmem:[#allocation12 + $0x8] sm:$0xc] %vm405, %v1810
    %v1813 = vrot.slane %v1807, 2
    %1814 = vrot.lane.b32.xlu0 %v1813, 32
    %v1815 = vpop.permute.xlu0 %1814
    %v1816 = vsel %vm112, %v1815, 0
    %1818 = vmatprep.subr.mxu0 0.0
    %1819 = vmatpush1.msra.mxu0 %v1075
    %1820 = vmatprep.subr.mxu0 0.0
    %1821 = vmatpush1.msra.mxu0 %v1076
    %1822 = vmatprep.subr.mxu0 0.0
    %1823 = vmatpush1.msra.mxu0 %v1077
    %1824 = vmatprep.subr.mxu0 0.0
    %1825 = vmatpush1.msra.mxu0 %v1078
    %1826 = vmatprep.subr.mxu0 0.0
    %1827 = vmatpush1.msra.mxu0 0.0
    %1828 = vmatprep.subr.mxu0 0.0
    %1829 = vmatpush1.msra.mxu0 0.0
    %1830 = vmatprep.subr.mxu0 0.0
    %1831 = vmatpush1.msra.mxu0 0.0
    %1832 = vmatprep.subr.mxu0 0.0
    %1833 = vmatpush1.msra.mxu0 0.0
    %1834 = vmatprep.subr.mxu0 0.0
    %1835 = vmatpush1.msra.mxu0 0.0
    %1836 = vmatprep.subr.mxu0 0.0
    %1837 = vmatpush1.msra.mxu0 0.0
    %1838 = vmatprep.subr.mxu0 0.0
    %1839 = vmatpush1.msra.mxu0 0.0
    %1840 = vmatprep.subr.mxu0 0.0
    %1841 = vmatpush1.msra.mxu0 0.0
    %1842 = vmatprep.subr.mxu0 0.0
    %1843 = vmatpush1.msra.mxu0 0.0
    %1844 = vmatprep.subr.mxu0 0.0
    %1845 = vmatpush1.msra.mxu0 0.0
    %1846 = vmatprep.subr.mxu0 0.0
    %1847 = vmatpush1.msra.mxu0 0.0
    %1848 = vmatprep.subr.mxu0 0.0
    %1849 = vmatpush1.msra.mxu0 0.0
    %1850 = vmatprep.subr.mxu0 0.0
    %1851 = vmatpush1.msra.mxu0 0.0
    %1852 = vmatprep.subr.mxu0 0.0
    %1853 = vmatpush1.msra.mxu0 0.0
    %1854 = vmatprep.subr.mxu0 0.0
    %1855 = vmatpush1.msra.mxu0 0.0
    %1856 = vmatprep.subr.mxu0 0.0
    %1857 = vmatpush1.msra.mxu0 0.0
    %1858 = vmatprep.subr.mxu0 0.0
    %1859 = vmatpush1.msra.mxu0 0.0
    %1860 = vmatprep.subr.mxu0 0.0
    %1861 = vmatpush1.msra.mxu0 0.0
    %1862 = vmatprep.subr.mxu0 0.0
    %1863 = vmatpush1.msra.mxu0 0.0
    %1864 = vmatprep.subr.mxu0 0.0
    %1865 = vmatpush1.msra.mxu0 0.0
    %1866 = vmatprep.subr.mxu0 0.0
    %1867 = vmatpush1.msra.mxu0 0.0
    %1868 = vmatprep.subr.mxu0 0.0
    %1869 = vmatpush1.msra.mxu0 0.0
    %1870 = vmatprep.subr.mxu0 0.0
    %1871 = vmatpush1.msra.mxu0 0.0
    %1872 = vmatprep.subr.mxu0 0.0
    %1873 = vmatpush1.msra.mxu0 0.0
    %1874 = vmatprep.subr.mxu0 0.0
    %1875 = vmatpush1.msra.mxu0 0.0
    %1876 = vmatprep.subr.mxu0 0.0
    %1877 = vmatpush1.msra.mxu0 0.0
    %1878 = vmatprep.subr.mxu0 0.0
    %1879 = vmatpush1.msra.mxu0 0.0
    %1880 = vmatprep.subr.mxu0 0.0
    %1881 = vmatpush1.msra.mxu0 0.0
    %1882 = vmatprep.mubr.f32.mxu0 0.0
    %1883 = vmatmul.mubr.f32.gmra.mrb[0].mxu0 %v1816
    %v1884 = vpop.f32.mrb[0].mxu0
    %v1885 = vadd.f32 0.0, %v1884
    %v1886 = vpop.f32.mrb[0].mxu0
    %1887 = vdwg.mxu0
    %v1889 = vrot.slane %v1885, 4
    %v1891 = vadd.f32 %v1164, %v1889
    %v1892 = vxor.u32 %v1891, 2147483648
    %v1893 = vmul.f32 %v1892, 1.442695
    %v1894 = vpow.pop %v1893
    %v1895 = vadd.f32 %v1894, 1.0
    %v1896 = vrcp.pop %v1895
    %v1897 = vmul.f32 1.0, %v1896
    %v1898 = vtanh.pop %v1891
    %v1900 = vrot.slane %v1801, 6
    %v1902 = vmul.f32 %v1897, %v1900
    %1904 = vrot.lane.b32.xlu0 %v1898, 64
    %v1905 = vpop.permute.xlu0 %1904
    %v1907 = vmul.f32 %v1897, %v1905
    %1909 = vrot.lane.b32.xlu0 %v1907, 32
    %v1910 = vpop.permute.xlu0 %1909
    %v1912 = vadd.f32 %v1902, %v1910
    %v1913 = vtanh.pop %v1912
    %1915 = vrot.lane.b32.xlu0 %v1913, 64
    %v1916 = vpop.permute.xlu0 %1915
    %v1918 = vmul.f32 %v1897, %v1916
    %1920 = vrot.lane.b32.xlu0 %v1918, 32
    %v1921 = vpop.permute.xlu0 %1920
    %1923 = vst.msk [vmem:[#allocation12 + $0x8] sm:$0x30] %vm517, %v1921
    %v1924 = vrot.slane %v1918, 4
    %1925 = vrot.lane.b32.xlu0 %v1924, 32
    %v1926 = vpop.permute.xlu0 %1925
    %v1927 = vsel %vm112, %v1926, 0
    %1929 = vmatprep.subr.mxu0 0.0
    %1930 = vmatpush1.msra.mxu0 %v1075
    %1931 = vmatprep.subr.mxu0 0.0
    %1932 = vmatpush1.msra.mxu0 %v1076
    %1933 = vmatprep.subr.mxu0 0.0
    %1934 = vmatpush1.msra.mxu0 %v1077
    %1935 = vmatprep.subr.mxu0 0.0
    %1936 = vmatpush1.msra.mxu0 %v1078
    %1937 = vmatprep.subr.mxu0 0.0
    %1938 = vmatpush1.msra.mxu0 0.0
    %1939 = vmatprep.subr.mxu0 0.0
    %1940 = vmatpush1.msra.mxu0 0.0
    %1941 = vmatprep.subr.mxu0 0.0
    %1942 = vmatpush1.msra.mxu0 0.0
    %1943 = vmatprep.subr.mxu0 0.0
    %1944 = vmatpush1.msra.mxu0 0.0
    %1945 = vmatprep.subr.mxu0 0.0
    %1946 = vmatpush1.msra.mxu0 0.0
    %1947 = vmatprep.subr.mxu0 0.0
    %1948 = vmatpush1.msra.mxu0 0.0
    %1949 = vmatprep.subr.mxu0 0.0
    %1950 = vmatpush1.msra.mxu0 0.0
    %1951 = vmatprep.subr.mxu0 0.0
    %1952 = vmatpush1.msra.mxu0 0.0
    %1953 = vmatprep.subr.mxu0 0.0
    %1954 = vmatpush1.msra.mxu0 0.0
    %1955 = vmatprep.subr.mxu0 0.0
    %1956 = vmatpush1.msra.mxu0 0.0
    %1957 = vmatprep.subr.mxu0 0.0
    %1958 = vmatpush1.msra.mxu0 0.0
    %1959 = vmatprep.subr.mxu0 0.0
    %1960 = vmatpush1.msra.mxu0 0.0
    %1961 = vmatprep.subr.mxu0 0.0
    %1962 = vmatpush1.msra.mxu0 0.0
    %1963 = vmatprep.subr.mxu0 0.0
    %1964 = vmatpush1.msra.mxu0 0.0
    %1965 = vmatprep.subr.mxu0 0.0
    %1966 = vmatpush1.msra.mxu0 0.0
    %1967 = vmatprep.subr.mxu0 0.0
    %1968 = vmatpush1.msra.mxu0 0.0
    %1969 = vmatprep.subr.mxu0 0.0
    %1970 = vmatpush1.msra.mxu0 0.0
    %1971 = vmatprep.subr.mxu0 0.0
    %1972 = vmatpush1.msra.mxu0 0.0
    %1973 = vmatprep.subr.mxu0 0.0
    %1974 = vmatpush1.msra.mxu0 0.0
    %1975 = vmatprep.subr.mxu0 0.0
    %1976 = vmatpush1.msra.mxu0 0.0
    %1977 = vmatprep.subr.mxu0 0.0
    %1978 = vmatpush1.msra.mxu0 0.0
    %1979 = vmatprep.subr.mxu0 0.0
    %1980 = vmatpush1.msra.mxu0 0.0
    %1981 = vmatprep.subr.mxu0 0.0
    %1982 = vmatpush1.msra.mxu0 0.0
    %1983 = vmatprep.subr.mxu0 0.0
    %1984 = vmatpush1.msra.mxu0 0.0
    %1985 = vmatprep.subr.mxu0 0.0
    %1986 = vmatpush1.msra.mxu0 0.0
    %1987 = vmatprep.subr.mxu0 0.0
    %1988 = vmatpush1.msra.mxu0 0.0
    %1989 = vmatprep.subr.mxu0 0.0
    %1990 = vmatpush1.msra.mxu0 0.0
    %1991 = vmatprep.subr.mxu0 0.0
    %1992 = vmatpush1.msra.mxu0 0.0
    %1993 = vmatprep.mubr.f32.mxu0 0.0
    %1994 = vmatmul.mubr.f32.gmra.mrb[0].mxu0 %v1927
    %v1995 = vpop.f32.mrb[0].mxu0
    %v1996 = vadd.f32 0.0, %v1995
    %v1997 = vpop.f32.mrb[0].mxu0
    %1998 = vdwg.mxu0
    %v2000 = vrot.slane %v1996, 2
    %v2002 = vadd.f32 %v1164, %v2000
    %v2003 = vxor.u32 %v2002, 2147483648
    %v2004 = vmul.f32 %v2003, 1.442695
    %v2005 = vpow.pop %v2004
    %v2006 = vadd.f32 %v2005, 1.0
    %v2007 = vrcp.pop %v2006
    %v2008 = vmul.f32 1.0, %v2007
    %v2009 = vtanh.pop %v2002
    %v2011 = vrot.slane %v1912, 6
    %v2013 = vmul.f32 %v2008, %v2011
    %2015 = vrot.lane.b32.xlu0 %v2009, 64
    %v2016 = vpop.permute.xlu0 %2015
    %v2018 = vmul.f32 %v2008, %v2016
    %2020 = vrot.lane.b32.xlu0 %v2018, 32
    %v2021 = vpop.permute.xlu0 %2020
    %v2023 = vadd.f32 %v2013, %v2021
    %v2024 = vtanh.pop %v2023
    %2026 = vrot.lane.b32.xlu0 %v2024, 64
    %v2027 = vpop.permute.xlu0 %2026
    %v2029 = vmul.f32 %v2008, %v2027
    %2031 = vrot.lane.b32.xlu0 %v2029, 32
    %v2032 = vpop.permute.xlu0 %2031
    %2034 = vst.msk [vmem:[#allocation12 + $0x8] sm:$0xc0] %vm629, %v2032
    // Predicated region
    $region50: #{tpu_custom_call.1} parent=1 // pred_check
      _
    $region51: #{tpu_custom_call.1} parent=1 // pred_check_branch
      %2036 = sbr.rel (0) target = $region53
    $region52: #{tpu_custom_call.1} parent=1 // pred_region
      %s2038 = ssub.s32 256, 256
      %2039 = vsyncadd [#allocation5], %s2038
      %s2040 = sshll.u32 [#allocation12], 4
      %s2041 = int_to_ptr.vmem [resolvable:$true] %s2040
      %2046 = dma.vmem_to_hbm [thread:$0]  %s2041, 256, %s7, [#allocation5], 128, 128, 8
    $region53: #{tpu_custom_call.1} parent=1 // pred_fallthru
      _
    // Predicated region
    $region54: #{tpu_custom_call.1} parent=1 // pred_check
      _
    $region55: #{tpu_custom_call.1} parent=1 // pred_check_branch
      %2048 = sbr.rel (0) target = $region57
    $region56: #{tpu_custom_call.1} parent=1 // pred_region
      %2049 = dma.done [#allocation5], 256
    $region57: #{tpu_custom_call.1} parent=1 // pred_fallthru
      _
    %2050 = vsyncpa [#allocation4], 1
    %2051 = vsyncpa [#allocation7], 1
    %2052 = vsyncpa [#allocation10], 1
    %2053 = vsyncpa [#allocation5], 1

</llo_original>
